<compile_context>
chip_gen: v5e
topology: v5e:2x2
jax: 0.10.0
libtpu: 0.0.40
codegen_flags: <defaults>
</compile_context>

<pallas_src>
import functools

import jax
import jax.numpy as jnp
from jax.experimental import pallas as pl
from jax.experimental.pallas import tpu as pltpu

LANE = 128
MAX_TILE = 512          # lanes per block: >=512 (v5e store slot), tiny VMEM footprint (v7x)
LN_EPS = 1e-5           # F.layer_norm default eps
VLN_EPS = 1e-3          # VNLayerNorm eps
NL_CLAMP = 1e-6         # NonLinearity norm clamp
NEG_SLOPE = 0.2         # VNLeakyReLU negative slope
DIR_EPS = 1e-8          # VNLeakyReLU direction eps


# ----------------------------------------------------------------------------
# lane-axis helpers
# ----------------------------------------------------------------------------
def _pad_lanes(x):
    m = x.shape[-1]
    mp = ((m + LANE - 1) // LANE) * LANE
    if mp != m:
        x = jnp.pad(x, [(0, 0)] * (x.ndim - 1) + [(0, mp - m)])
    return x, m, mp


def _lane_tile(mp):
    t = min(mp, MAX_TILE)
    while mp % t:
        t -= LANE
    return t


def _ln_channels(x, gamma):
    """LayerNorm over the channel (sublane) axis 0 of x:[C, Mt]; gamma:[C, 1]."""
    mu = jnp.mean(x, axis=0, keepdims=True)
    d = x - mu
    var = jnp.mean(d * d, axis=0, keepdims=True)
    return d * jax.lax.rsqrt(var + LN_EPS) * gamma


# ----------------------------------------------------------------------------
# Kernel 1: conv-as-matmul over im2col'd input (the Convolutional module's FLOPs)
# ----------------------------------------------------------------------------
def _conv_matmul_kernel(w_ref, x_ref, o_ref):
    w = w_ref[...]
    for g in range(x_ref.shape[0]):            # G in {1, 2}, unrolled at trace time
        o_ref[g] = jnp.dot(w, x_ref[g], preferred_element_type=jnp.float32)


def _conv_matmul(w_col, x_col):
    """w_col:[Co,K], x_col:[G,K,M] -> [G,Co,M] with a lane-tiled 'parallel' grid."""
    co, k = w_col.shape
    g = x_col.shape[0]
    xp, m, mp = _pad_lanes(x_col)
    t = _lane_tile(mp)
    out = pl.pallas_call(
        _conv_matmul_kernel,
        out_shape=jax.ShapeDtypeStruct((g, co, mp), jnp.float32),
        grid=(mp // t,),
        in_specs=[pl.BlockSpec((co, k), lambda j: (0, 0)),
                  pl.BlockSpec((g, k, t), lambda j: (0, 0, j))],
        out_specs=pl.BlockSpec((g, co, t), lambda j: (0, 0, j)),
        compiler_params=pltpu.CompilerParams(dimension_semantics=("parallel",)),
    )(w_col, xp)
    return out[..., :m]


def _im2col(x, kh, stride, pad):
    """x:[G,C,B,N] -> ([G, C*kh, B*N_out], N_out), replicate padding along N."""
    gdim, c, b, n = x.shape
    if pad:
        x = jnp.pad(x, ((0, 0), (0, 0), (0, 0), (pad, pad)), mode="edge")
    npad = x.shape[-1]
    n_out = (npad - kh) // stride + 1
    taps = [x[..., k:k + stride * n_out:stride] for k in range(kh)]   # [G,C,B,N_out]
    cols = jnp.stack(taps, axis=2)                                    # [G,C,kh,B,N_out]
    return cols.reshape(gdim, c * kh, b * n_out), n_out


def conv_pallas(v_bn, s_bn, w_vec, w_sca, stride, pad, kh):
    """Convolutional.forward.  v_bn:[B,N,2,Cv], s_bn:[B,N,Cs] -> ([2,Co,M'], [Co,M'], N')."""
    ortho = jnp.concatenate([-v_bn[:, :, 1:2, :], v_bn[:, :, 0:1, :]], axis=2)
    u = jnp.concatenate([v_bn, ortho], axis=-1)          # [B,N,2,2Cv]
    u = jnp.transpose(u, (2, 3, 0, 1))                   # [2, 2Cv, B, N]
    sg = jnp.transpose(s_bn, (2, 0, 1))[None]            # [1, Cs,  B, N]
    xv, n_out = _im2col(u, kh, stride, pad)
    xs, _ = _im2col(sg, kh, stride, pad)
    wv = w_vec[..., 0].reshape(w_vec.shape[0], -1)       # [Co, 2Cv*kh]
    ws = w_sca[..., 0].reshape(w_sca.shape[0], -1)       # [Co, Cs*kh]
    v_out = _conv_matmul(wv, xv)                         # [2, Co, M']
    s_out = _conv_matmul(ws, xs)[0]                      # [Co, M']
    return v_out, s_out, n_out


# ----------------------------------------------------------------------------
# Kernel 2: fused NonLinearity + VNLayerNorm + scalar LayerNorm
# ----------------------------------------------------------------------------
def _nlnorm_kernel(v_ref, s_ref, w_ref, gnl_ref, gv_ref, gs_ref, ov_ref, os_ref):
    i = s_ref.shape[0]
    v0, v1 = v_ref[0], v_ref[1]                          # [i, Mt] each
    s = s_ref[...]
    w = w_ref[...]                                       # [2i, 2i]
    # NonLinearity -----------------------------------------------------------
    sumsq = v0 * v0 + v1 * v1                            # unrolled D-reduction (VPU)
    vnorm = jnp.sqrt(sumsq)
    y = (jnp.dot(w[:, :i], vnorm, preferred_element_type=jnp.float32)
         + jnp.dot(w[:, i:], s, preferred_element_type=jnp.float32))     # [2i, Mt]
    y = _ln_channels(y, gnl_ref[...])
    a_v, a_s = y[:i, :], y[i:, :]
    inv_n = jax.lax.rsqrt(jnp.maximum(sumsq, NL_CLAMP * NL_CLAMP))
    scale = a_v * inv_n
    u0, u1 = v0 * scale, v1 * scale
    # VNLayerNorm ------------------------------------------------------------
    sumsq2 = u0 * u0 + u1 * u1
    n2 = jnp.sqrt(sumsq2)
    ln2 = _ln_channels(n2, gv_ref[...])
    sc2 = ln2 * jax.lax.rsqrt(jnp.maximum(sumsq2, VLN_EPS * VLN_EPS))
    ov_ref[0] = u0 * sc2                                 # per-d dense stores
    ov_ref[1] = u1 * sc2
    # scalar LayerNorm -------------------------------------------------------
    os_ref[...] = _ln_channels(a_s, gs_ref[...])


def nlnorm_pallas(v, s, w_nl, g_nl, g_vln, g_sln):
    """Fused NonLinearity -> (VNLayerNorm on vector, LayerNorm on scalar)."""
    i = s.shape[0]
    vp, m, mp = _pad_lanes(v)
    sp, _, _ = _pad_lanes(s)
    t = _lane_tile(mp)
    ov, os_ = pl.pallas_call(
        _nlnorm_kernel,
        out_shape=(jax.ShapeDtypeStruct((2, i, mp), jnp.float32),
                   jax.ShapeDtypeStruct((i, mp), jnp.float32)),
        grid=(mp // t,),
        in_specs=[pl.BlockSpec((2, i, t), lambda j: (0, 0, j)),
                  pl.BlockSpec((i, t), lambda j: (0, j)),
                  pl.BlockSpec((2 * i, 2 * i), lambda j: (0, 0)),
                  pl.BlockSpec((2 * i, 1), lambda j: (0, 0)),
                  pl.BlockSpec((i, 1), lambda j: (0, 0)),
                  pl.BlockSpec((i, 1), lambda j: (0, 0))],
        out_specs=(pl.BlockSpec((2, i, t), lambda j: (0, 0, j)),
                   pl.BlockSpec((i, t), lambda j: (0, j))),
        compiler_params=pltpu.CompilerParams(dimension_semantics=("parallel",)),
    )(vp, sp, w_nl, g_nl.reshape(-1, 1), g_vln.reshape(-1, 1), g_sln.reshape(-1, 1))
    return ov[..., :m], os_[..., :m]


# ----------------------------------------------------------------------------
# Kernel 3: fused (optional residual add) + VNLeakyReLU (vector) + ReLU (scalar)
# ----------------------------------------------------------------------------
def _act_core(v0, v1, s, w, ov_ref, os_ref):
    d0 = jnp.dot(w, v0, preferred_element_type=jnp.float32)
    d1 = jnp.dot(w, v1, preferred_element_type=jnp.float32)
    dot = v0 * d0 + v1 * d1                              # D-reduction, unrolled
    dsq = d0 * d0 + d1 * d1
    neg = jnp.where(dot >= 0, 0.0, dot / (dsq + DIR_EPS))   # (1-mask)*dot/(|d|^2+eps)
    ov_ref[0] = NEG_SLOPE * v0 + (1.0 - NEG_SLOPE) * (v0 - neg * d0)
    ov_ref[1] = NEG_SLOPE * v1 + (1.0 - NEG_SLOPE) * (v1 - neg * d1)
    os_ref[...] = jnp.maximum(s, 0.0)


def _act_kernel(v_ref, s_ref, w_ref, ov_ref, os_ref):
    _act_core(v_ref[0], v_ref[1], s_ref[...], w_ref[...], ov_ref, os_ref)


def _act_res_kernel(v_ref, s_ref, rv_ref, rs_ref, w_ref, ov_ref, os_ref):
    _act_core(v_ref[0] + rv_ref[0], v_ref[1] + rv_ref[1],
              s_ref[...] + rs_ref[...], w_ref[...], ov_ref, os_ref)


def act_pallas(v, s, w_dir, res_v=None, res_s=None):
    i = s.shape[0]
    vp, m, mp = _pad_lanes(v)
    sp, _, _ = _pad_lanes(s)
    t = _lane_tile(mp)
    vspec = pl.BlockSpec((2, i, t), lambda j: (0, 0, j))
    sspec = pl.BlockSpec((i, t), lambda j: (0, j))
    wspec = pl.BlockSpec((i, i), lambda j: (0, 0))
    if res_v is None:
        kernel, in_specs, args = _act_kernel, [vspec, sspec, wspec], (vp, sp, w_dir)
    else:
        rvp, _, _ = _pad_lanes(res_v)
        rsp, _, _ = _pad_lanes(res_s)
        kernel = _act_res_kernel
        in_specs = [vspec, sspec, vspec, sspec, wspec]
        args = (vp, sp, rvp, rsp, w_dir)
    ov, os_ = pl.pallas_call(
        kernel,
        out_shape=(jax.ShapeDtypeStruct((2, i, mp), jnp.float32),
                   jax.ShapeDtypeStruct((i, mp), jnp.float32)),
        grid=(mp // t,),
        in_specs=in_specs,
        out_specs=(vspec, sspec),
        compiler_params=pltpu.CompilerParams(dimension_semantics=("parallel",)),
    )(*args)
    return ov[..., :m], os_[..., :m]


# ----------------------------------------------------------------------------
# Full block forward (Pallas path)
# ----------------------------------------------------------------------------
def _lane_to_bn(v_lane, s_lane, b):
    c = v_lane.shape[1]
    n = v_lane.shape[-1] // b
    v = jnp.transpose(v_lane.reshape(2, c, b, n), (2, 3, 0, 1))   # [B,N,2,C]
    s = jnp.transpose(s_lane.reshape(s_lane.shape[0], b, n), (1, 2, 0))
    return v, s


def basic_block_forward(v, s, params, *, stride=1, padding=1, downsample=False):
    """BasicBlock1D_flatten_LN.forward.  v:[B,N,2,indim//2], s:[B,N,indim//2]."""
    b = v.shape[0]
    v1, s1, _ = conv_pallas(v, s, params["conv1_wv"], params["conv1_ws"], stride, padding, 3)
    v2, s2 = nlnorm_pallas(v1, s1, params["nl1_w"], params["nl1_g"],
                           params["vbn1_g"], params["sbn1_g"])
    v3, s3 = act_pallas(v2, s2, params["vr1_w"])
    v3_bn, s3_bn = _lane_to_bn(v3, s3, b)
    v4, s4, _ = conv_pallas(v3_bn, s3_bn, params["conv2_wv"], params["conv2_ws"], 1, padding, 3)
    v5, s5 = nlnorm_pallas(v4, s4, params["nl2_w"], params["nl2_g"],
                           params["vbn2_g"], params["sbn2_g"])
    if downsample:
        rv1, rs1, _ = conv_pallas(v, s, params["dconv1_wv"], params["dconv1_ws"], stride, 0, 1)
        rv2, rs2 = nlnorm_pallas(rv1, rs1, params["dnl1_w"], params["dnl1_g"],
                                 params["dvbn1_g"], params["dsbn1_g"])
        vo, so = act_pallas(v5, s5, params["vro_w"], res_v=rv2, res_s=rs2)
    else:
        vo, so = act_pallas(v5, s5, params["vro_w"])
    return _lane_to_bn(vo, so, b)


# ----------------------------------------------------------------------------
# Pure-JAX reference (mirrors the PyTorch module, independent code path)
# ----------------------------------------------------------------------------
def _layer_norm_ref(x, gamma):
    mu = x.mean(-1, keepdims=True)
    var = ((x - mu) ** 2).mean(-1, keepdims=True)
    return (x - mu) / jnp.sqrt(var + LN_EPS) * gamma


def _conv_fwd_ref(v, s, w_vec, w_sca, stride, pad):
    ortho = jnp.concatenate([-v[:, :, 1:2, :], v[:, :, 0:1, :]], axis=2)
    u = jnp.transpose(jnp.concatenate([v, ortho], axis=-1), (0, 3, 1, 2))   # [B,2Cv,N,2]
    sp = jnp.transpose(s[:, :, None, :], (0, 3, 1, 2))                      # [B,Cs,N,1]

    def conv(x, w):
        if pad:
            x = jnp.pad(x, ((0, 0), (0, 0), (pad, pad), (0, 0)), mode="edge")
        return jax.lax.conv_general_dilated(
            x, w, window_strides=(stride, 1), padding="VALID",
            dimension_numbers=("NCHW", "OIHW", "NCHW"))

    vo = jnp.transpose(conv(u, w_vec), (0, 2, 3, 1))
    so = jnp.transpose(conv(sp, w_sca), (0, 2, 3, 1))[:, :, 0, :]
    return vo, so


def _nonlinearity_ref(v, s, w, gamma, i):
    n = jnp.sqrt((v * v).sum(-2))
    x = _layer_norm_ref(jnp.concatenate([n, s], axis=-1) @ w.T, gamma)
    vo = x[..., :i][..., None, :] * (v / jnp.maximum(n, NL_CLAMP)[..., None, :])
    return vo, x[..., i:]


def _vnlayernorm_ref(v, gamma):
    n = jnp.sqrt((v * v).sum(-2))
    return (v / jnp.maximum(n, VLN_EPS)[..., None, :]) * _layer_norm_ref(n, gamma)[..., None, :]


def _vnleakyrelu_ref(x, w):
    d = x @ w.T
    dot = (x * d).sum(-2, keepdims=True)
    mask = (dot >= 0).astype(x.dtype)
    return (NEG_SLOPE * x + (1 - NEG_SLOPE)
            * (mask * x + (1 - mask) * (x - dot / ((d * d).sum(-2, keepdims=True) + DIR_EPS) * d)))


def basic_block_ref(v, s, params, *, i, stride=1, padding=1, downsample=False):
    res_v, res_s = v, s
    v, s = _conv_fwd_ref(v, s, params["conv1_wv"], params["conv1_ws"], stride, padding)
    v, s = _nonlinearity_ref(v, s, params["nl1_w"], params["nl1_g"], i)
    v = _vnlayernorm_ref(v, params["vbn1_g"])
    s = _layer_norm_ref(s, params["sbn1_g"])
    v = _vnleakyrelu_ref(v, params["vr1_w"])
    s = jnp.maximum(s, 0.0)
    v, s = _conv_fwd_ref(v, s, params["conv2_wv"], params["conv2_ws"], 1, padding)
    v, s = _nonlinearity_ref(v, s, params["nl2_w"], params["nl2_g"], i)
    v = _vnlayernorm_ref(v, params["vbn2_g"])
    s = _layer_norm_ref(s, params["sbn2_g"])
    if downsample:
        rv, rs = _conv_fwd_ref(res_v, res_s, params["dconv1_wv"], params["dconv1_ws"], stride, 0)
        rv, rs = _nonlinearity_ref(rv, rs, params["dnl1_w"], params["dnl1_g"], i)
        rv = _vnlayernorm_ref(rv, params["dvbn1_g"])
        rs = _layer_norm_ref(rs, params["dsbn1_g"])
        v = v + rv
        s = s + rs
    return _vnleakyrelu_ref(v, params["vro_w"]), jnp.maximum(s, 0.0)


# ----------------------------------------------------------------------------
# Demo
# ----------------------------------------------------------------------------
def _make_params(key, indim, i):
    ks = iter(jax.random.split(key, 24))

    def w(shape, fan_in):
        return jax.random.normal(next(ks), shape, jnp.float32) / jnp.sqrt(float(fan_in))

    def g(dim):
        return 1.0 + 0.1 * jax.random.normal(next(ks), (dim,), jnp.float32)

    return dict(
        conv1_wv=w((i, indim, 3, 1), indim * 3), conv1_ws=w((i, indim // 2, 3, 1), indim // 2 * 3),
        nl1_w=w((2 * i, 2 * i), 2 * i), nl1_g=g(2 * i), vbn1_g=g(i), sbn1_g=g(i),
        vr1_w=w((i, i), i),
        conv2_wv=w((i, 2 * i, 3, 1), 2 * i * 3), conv2_ws=w((i, i, 3, 1), i * 3),
        nl2_w=w((2 * i, 2 * i), 2 * i), nl2_g=g(2 * i), vbn2_g=g(i), sbn2_g=g(i),
        vro_w=w((i, i), i),
        dconv1_wv=w((i, indim, 1, 1), indim), dconv1_ws=w((i, indim // 2, 1, 1), indim // 2),
        dnl1_w=w((2 * i, 2 * i), 2 * i), dnl1_g=g(2 * i), dvbn1_g=g(i), dsbn1_g=g(i),
    )


if __name__ == "__main__":
    key = jax.random.PRNGKey(0)
    B, N, indim, i = 2, 16, 16, 8                 # v:[B,N,2,indim//2], s:[B,N,indim//2]
    kv, ks_, kp = jax.random.split(key, 3)
    v = jax.random.normal(kv, (B, N, 2, indim // 2), dtype=jnp.float32)
    s = jax.random.normal(ks_, (B, N, indim // 2), dtype=jnp.float32)
    params = _make_params(kp, indim, i)

    fwd = jax.jit(functools.partial(basic_block_forward, stride=1, padding=1, downsample=True))
    v_out, s_out = fwd(v, s, params)
    v_out, s_out = jax.block_until_ready((v_out, s_out))

    v_ref, s_ref = basic_block_ref(v, s, params, i=i, stride=1, padding=1, downsample=True)
    assert v_out.shape == v_ref.shape and s_out.shape == s_ref.shape
    assert jnp.allclose(v_out, v_ref, atol=1e-4, rtol=1e-4), "vector output mismatch"
    assert jnp.allclose(s_out, s_ref, atol=1e-4, rtol=1e-4), "scalar output mismatch"
    print("KERNEL_OK")
</pallas_src>

<mosaic_0001>
module attributes {stable_mosaic.version = 11 : i64} {
  func.func @_conv_matmul_kernel(%arg0: i32, %arg1: memref<8x16xf32, #tpu.memory_space<vmem>>, %arg2: memref<2x16x128xf32, #tpu.memory_space<vmem>>, %arg3: memref<2x8x128xf32, #tpu.memory_space<vmem>>) attributes {dimension_semantics = [#tpu.dimension_semantics<parallel>], iteration_bounds = array<i64: 1>, scalar_prefetch = 0 : i64, scratch_operands = 0 : i64, tpu.core_type = #tpu.core_type<tc>, window_params = [{pipeline_mode = #tpu.pipeline_mode<synchronous>, transform_indices = @transform_0, window_bounds = array<i64: 8, 16>}, {transform_indices = @transform_1, window_bounds = array<i64: 2, 16, 128>}, {transform_indices = @transform_2, window_bounds = array<i64: 2, 8, 128>}]} {
    %c0 = arith.constant 0 : index
    %c0_0 = arith.constant 0 : index
    %0 = vector.load %arg1[%c0, %c0_0] : memref<8x16xf32, #tpu.memory_space<vmem>>, vector<8x16xf32>
    %c0_1 = arith.constant 0 : index
    %c0_2 = arith.constant 0 : index
    %c0_3 = arith.constant 0 : index
    %1 = vector.load %arg2[%c0_1, %c0_2, %c0_3] : memref<2x16x128xf32, #tpu.memory_space<vmem>>, vector<1x16x128xf32>
    %2 = vector.shape_cast %1 : vector<1x16x128xf32> to vector<16x128xf32>
    %cst = arith.constant dense<0.000000e+00> : vector<8x128xf32>
    %3 = tpu.matmul %0, %2, %cst {dimension_numbers = #tpu.dot_dimension_numbers<[1], [0], [0], [1], [0, 0, 1, 1], [], []>} : vector<8x16xf32>, vector<16x128xf32>, vector<8x128xf32> -> vector<8x128xf32>
    %c0_4 = arith.constant 0 : index
    %c0_5 = arith.constant 0 : index
    %c0_6 = arith.constant 0 : index
    %4 = vector.load %arg3[%c0_4, %c0_5, %c0_6] : memref<2x8x128xf32, #tpu.memory_space<vmem>>, vector<1x8x128xf32>
    %5 = vector.shape_cast %4 : vector<1x8x128xf32> to vector<8x128xf32>
    %6 = vector.shape_cast %3 : vector<8x128xf32> to vector<1x8x128xf32>
    tpu.vector_store %arg3[%c0_4, %c0_5, %c0_6], %6 {strides = array<i32>} : memref<2x8x128xf32, #tpu.memory_space<vmem>>, vector<1x8x128xf32>,
    %c1 = arith.constant 1 : index
    %c0_7 = arith.constant 0 : index
    %c0_8 = arith.constant 0 : index
    %7 = vector.load %arg2[%c1, %c0_7, %c0_8] : memref<2x16x128xf32, #tpu.memory_space<vmem>>, vector<1x16x128xf32>
    %8 = vector.shape_cast %7 : vector<1x16x128xf32> to vector<16x128xf32>
    %cst_9 = arith.constant dense<0.000000e+00> : vector<8x128xf32>
    %9 = tpu.matmul %0, %8, %cst_9 {dimension_numbers = #tpu.dot_dimension_numbers<[1], [0], [0], [1], [0, 0, 1, 1], [], []>} : vector<8x16xf32>, vector<16x128xf32>, vector<8x128xf32> -> vector<8x128xf32>
    %c1_10 = arith.constant 1 : index
    %c0_11 = arith.constant 0 : index
    %c0_12 = arith.constant 0 : index
    %10 = vector.load %arg3[%c1_10, %c0_11, %c0_12] : memref<2x8x128xf32, #tpu.memory_space<vmem>>, vector<1x8x128xf32>
    %11 = vector.shape_cast %10 : vector<1x8x128xf32> to vector<8x128xf32>
    %12 = vector.shape_cast %9 : vector<8x128xf32> to vector<1x8x128xf32>
    tpu.vector_store %arg3[%c1_10, %c0_11, %c0_12], %12 {strides = array<i32>} : memref<2x8x128xf32, #tpu.memory_space<vmem>>, vector<1x8x128xf32>,
    return
  }
  func.func @transform_0(%arg0: i32) -> (i32, i32) {
    %c0_i32 = arith.constant 0 : i32
    %c0_i32_0 = arith.constant 0 : i32
    %c0_i32_1 = arith.constant 0 : i32
    return %c0_i32, %c0_i32_0 : i32, i32
  }
  func.func @transform_1(%arg0: i32) -> (i32, i32, i32) {
    %c0_i32 = arith.constant 0 : i32
    %c0_i32_0 = arith.constant 0 : i32
    %c0_i32_1 = arith.constant 0 : i32
    return %c0_i32, %c0_i32_0, %arg0 : i32, i32, i32
  }
  func.func @transform_2(%arg0: i32) -> (i32, i32, i32) {
    %c0_i32 = arith.constant 0 : i32
    %c0_i32_0 = arith.constant 0 : i32
    %c0_i32_1 = arith.constant 0 : i32
    return %c0_i32, %c0_i32_0, %arg0 : i32, i32, i32
  }
}

module attributes {stable_mosaic.version = 11 : i64} {
  func.func @_conv_matmul_kernel(%arg0: i32, %arg1: memref<8x48xf32, #tpu.memory_space<vmem>>, %arg2: memref<2x48x128xf32, #tpu.memory_space<vmem>>, %arg3: memref<2x8x128xf32, #tpu.memory_space<vmem>>) attributes {dimension_semantics = [#tpu.dimension_semantics<parallel>], iteration_bounds = array<i64: 1>, scalar_prefetch = 0 : i64, scratch_operands = 0 : i64, tpu.core_type = #tpu.core_type<tc>, window_params = [{pipeline_mode = #tpu.pipeline_mode<synchronous>, transform_indices = @transform_0, window_bounds = array<i64: 8, 48>}, {transform_indices = @transform_1, window_bounds = array<i64: 2, 48, 128>}, {transform_indices = @transform_2, window_bounds = array<i64: 2, 8, 128>}]} {
    %c0 = arith.constant 0 : index
    %c0_0 = arith.constant 0 : index
    %0 = vector.load %arg1[%c0, %c0_0] : memref<8x48xf32, #tpu.memory_space<vmem>>, vector<8x48xf32>
    %c0_1 = arith.constant 0 : index
    %c0_2 = arith.constant 0 : index
    %c0_3 = arith.constant 0 : index
    %1 = vector.load %arg2[%c0_1, %c0_2, %c0_3] : memref<2x48x128xf32, #tpu.memory_space<vmem>>, vector<1x48x128xf32>
    %2 = vector.shape_cast %1 : vector<1x48x128xf32> to vector<48x128xf32>
    %cst = arith.constant dense<0.000000e+00> : vector<8x128xf32>
    %3 = tpu.matmul %0, %2, %cst {dimension_numbers = #tpu.dot_dimension_numbers<[1], [0], [0], [1], [0, 0, 1, 1], [], []>} : vector<8x48xf32>, vector<48x128xf32>, vector<8x128xf32> -> vector<8x128xf32>
    %c0_4 = arith.constant 0 : index
    %c0_5 = arith.constant 0 : index
    %c0_6 = arith.constant 0 : index
    %4 = vector.load %arg3[%c0_4, %c0_5, %c0_6] : memref<2x8x128xf32, #tpu.memory_space<vmem>>, vector<1x8x128xf32>
    %5 = vector.shape_cast %4 : vector<1x8x128xf32> to vector<8x128xf32>
    %6 = vector.shape_cast %3 : vector<8x128xf32> to vector<1x8x128xf32>
    tpu.vector_store %arg3[%c0_4, %c0_5, %c0_6], %6 {strides = array<i32>} : memref<2x8x128xf32, #tpu.memory_space<vmem>>, vector<1x8x128xf32>,
    %c1 = arith.constant 1 : index
    %c0_7 = arith.constant 0 : index
    %c0_8 = arith.constant 0 : index
    %7 = vector.load %arg2[%c1, %c0_7, %c0_8] : memref<2x48x128xf32, #tpu.memory_space<vmem>>, vector<1x48x128xf32>
    %8 = vector.shape_cast %7 : vector<1x48x128xf32> to vector<48x128xf32>
    %cst_9 = arith.constant dense<0.000000e+00> : vector<8x128xf32>
    %9 = tpu.matmul %0, %8, %cst_9 {dimension_numbers = #tpu.dot_dimension_numbers<[1], [0], [0], [1], [0, 0, 1, 1], [], []>} : vector<8x48xf32>, vector<48x128xf32>, vector<8x128xf32> -> vector<8x128xf32>
    %c1_10 = arith.constant 1 : index
    %c0_11 = arith.constant 0 : index
    %c0_12 = arith.constant 0 : index
    %10 = vector.load %arg3[%c1_10, %c0_11, %c0_12] : memref<2x8x128xf32, #tpu.memory_space<vmem>>, vector<1x8x128xf32>
    %11 = vector.shape_cast %10 : vector<1x8x128xf32> to vector<8x128xf32>
    %12 = vector.shape_cast %9 : vector<8x128xf32> to vector<1x8x128xf32>
    tpu.vector_store %arg3[%c1_10, %c0_11, %c0_12], %12 {strides = array<i32>} : memref<2x8x128xf32, #tpu.memory_space<vmem>>, vector<1x8x128xf32>,
    return
  }
  func.func @transform_0(%arg0: i32) -> (i32, i32) {
    %c0_i32 = arith.constant 0 : i32
    %c0_i32_0 = arith.constant 0 : i32
    %c0_i32_1 = arith.constant 0 : i32
    return %c0_i32, %c0_i32_0 : i32, i32
  }
  func.func @transform_1(%arg0: i32) -> (i32, i32, i32) {
    %c0_i32 = arith.constant 0 : i32
    %c0_i32_0 = arith.constant 0 : i32
    %c0_i32_1 = arith.constant 0 : i32
    return %c0_i32, %c0_i32_0, %arg0 : i32, i32, i32
  }
  func.func @transform_2(%arg0: i32) -> (i32, i32, i32) {
    %c0_i32 = arith.constant 0 : i32
    %c0_i32_0 = arith.constant 0 : i32
    %c0_i32_1 = arith.constant 0 : i32
    return %c0_i32, %c0_i32_0, %arg0 : i32, i32, i32
  }
}

module attributes {stable_mosaic.version = 11 : i64} {
  func.func @_conv_matmul_kernel(%arg0: i32, %arg1: memref<8x8xf32, #tpu.memory_space<vmem>>, %arg2: memref<1x8x128xf32, #tpu.memory_space<vmem>>, %arg3: memref<1x8x128xf32, #tpu.memory_space<vmem>>) attributes {dimension_semantics = [#tpu.dimension_semantics<parallel>], iteration_bounds = array<i64: 1>, scalar_prefetch = 0 : i64, scratch_operands = 0 : i64, tpu.core_type = #tpu.core_type<tc>, window_params = [{pipeline_mode = #tpu.pipeline_mode<synchronous>, transform_indices = @transform_0, window_bounds = array<i64: 8, 8>}, {transform_indices = @transform_1, window_bounds = array<i64: 1, 8, 128>}, {transform_indices = @transform_2, window_bounds = array<i64: 1, 8, 128>}]} {
    %c0 = arith.constant 0 : index
    %c0_0 = arith.constant 0 : index
    %0 = vector.load %arg1[%c0, %c0_0] : memref<8x8xf32, #tpu.memory_space<vmem>>, vector<8x8xf32>
    %c0_1 = arith.constant 0 : index
    %c0_2 = arith.constant 0 : index
    %c0_3 = arith.constant 0 : index
    %1 = vector.load %arg2[%c0_1, %c0_2, %c0_3] : memref<1x8x128xf32, #tpu.memory_space<vmem>>, vector<1x8x128xf32>
    %2 = vector.shape_cast %1 : vector<1x8x128xf32> to vector<8x128xf32>
    %cst = arith.constant dense<0.000000e+00> : vector<8x128xf32>
    %3 = tpu.matmul %0, %2, %cst {dimension_numbers = #tpu.dot_dimension_numbers<[1], [0], [0], [1], [0, 0, 1, 1], [], []>} : vector<8x8xf32>, vector<8x128xf32>, vector<8x128xf32> -> vector<8x128xf32>
    %c0_4 = arith.constant 0 : index
    %c0_5 = arith.constant 0 : index
    %c0_6 = arith.constant 0 : index
    %4 = vector.load %arg3[%c0_4, %c0_5, %c0_6] : memref<1x8x128xf32, #tpu.memory_space<vmem>>, vector<1x8x128xf32>
    %5 = vector.shape_cast %4 : vector<1x8x128xf32> to vector<8x128xf32>
    %6 = vector.shape_cast %3 : vector<8x128xf32> to vector<1x8x128xf32>
    tpu.vector_store %arg3[%c0_4, %c0_5, %c0_6], %6 {strides = array<i32>} : memref<1x8x128xf32, #tpu.memory_space<vmem>>, vector<1x8x128xf32>,
    return
  }
  func.func @transform_0(%arg0: i32) -> (i32, i32) {
    %c0_i32 = arith.constant 0 : i32
    %c0_i32_0 = arith.constant 0 : i32
    %c0_i32_1 = arith.constant 0 : i32
    return %c0_i32, %c0_i32_0 : i32, i32
  }
  func.func @transform_1(%arg0: i32) -> (i32, i32, i32) {
    %c0_i32 = arith.constant 0 : i32
    %c0_i32_0 = arith.constant 0 : i32
    %c0_i32_1 = arith.constant 0 : i32
    return %c0_i32, %c0_i32_0, %arg0 : i32, i32, i32
  }
  func.func @transform_2(%arg0: i32) -> (i32, i32, i32) {
    %c0_i32 = arith.constant 0 : i32
    %c0_i32_0 = arith.constant 0 : i32
    %c0_i32_1 = arith.constant 0 : i32
    return %c0_i32, %c0_i32_0, %arg0 : i32, i32, i32
  }
}

module attributes {stable_mosaic.version = 11 : i64} {
  func.func @_conv_matmul_kernel(%arg0: i32, %arg1: memref<8x24xf32, #tpu.memory_space<vmem>>, %arg2: memref<1x24x128xf32, #tpu.memory_space<vmem>>, %arg3: memref<1x8x128xf32, #tpu.memory_space<vmem>>) attributes {dimension_semantics = [#tpu.dimension_semantics<parallel>], iteration_bounds = array<i64: 1>, scalar_prefetch = 0 : i64, scratch_operands = 0 : i64, tpu.core_type = #tpu.core_type<tc>, window_params = [{pipeline_mode = #tpu.pipeline_mode<synchronous>, transform_indices = @transform_0, window_bounds = array<i64: 8, 24>}, {transform_indices = @transform_1, window_bounds = array<i64: 1, 24, 128>}, {transform_indices = @transform_2, window_bounds = array<i64: 1, 8, 128>}]} {
    %c0 = arith.constant 0 : index
    %c0_0 = arith.constant 0 : index
    %0 = vector.load %arg1[%c0, %c0_0] : memref<8x24xf32, #tpu.memory_space<vmem>>, vector<8x24xf32>
    %c0_1 = arith.constant 0 : index
    %c0_2 = arith.constant 0 : index
    %c0_3 = arith.constant 0 : index
    %1 = vector.load %arg2[%c0_1, %c0_2, %c0_3] : memref<1x24x128xf32, #tpu.memory_space<vmem>>, vector<1x24x128xf32>
    %2 = vector.shape_cast %1 : vector<1x24x128xf32> to vector<24x128xf32>
    %cst = arith.constant dense<0.000000e+00> : vector<8x128xf32>
    %3 = tpu.matmul %0, %2, %cst {dimension_numbers = #tpu.dot_dimension_numbers<[1], [0], [0], [1], [0, 0, 1, 1], [], []>} : vector<8x24xf32>, vector<24x128xf32>, vector<8x128xf32> -> vector<8x128xf32>
    %c0_4 = arith.constant 0 : index
    %c0_5 = arith.constant 0 : index
    %c0_6 = arith.constant 0 : index
    %4 = vector.load %arg3[%c0_4, %c0_5, %c0_6] : memref<1x8x128xf32, #tpu.memory_space<vmem>>, vector<1x8x128xf32>
    %5 = vector.shape_cast %4 : vector<1x8x128xf32> to vector<8x128xf32>
    %6 = vector.shape_cast %3 : vector<8x128xf32> to vector<1x8x128xf32>
    tpu.vector_store %arg3[%c0_4, %c0_5, %c0_6], %6 {strides = array<i32>} : memref<1x8x128xf32, #tpu.memory_space<vmem>>, vector<1x8x128xf32>,
    return
  }
  func.func @transform_0(%arg0: i32) -> (i32, i32) {
    %c0_i32 = arith.constant 0 : i32
    %c0_i32_0 = arith.constant 0 : i32
    %c0_i32_1 = arith.constant 0 : i32
    return %c0_i32, %c0_i32_0 : i32, i32
  }
  func.func @transform_1(%arg0: i32) -> (i32, i32, i32) {
    %c0_i32 = arith.constant 0 : i32
    %c0_i32_0 = arith.constant 0 : i32
    %c0_i32_1 = arith.constant 0 : i32
    return %c0_i32, %c0_i32_0, %arg0 : i32, i32, i32
  }
  func.func @transform_2(%arg0: i32) -> (i32, i32, i32) {
    %c0_i32 = arith.constant 0 : i32
    %c0_i32_0 = arith.constant 0 : i32
    %c0_i32_1 = arith.constant 0 : i32
    return %c0_i32, %c0_i32_0, %arg0 : i32, i32, i32
  }
}

module attributes {stable_mosaic.version = 11 : i64} {
  func.func @_act_kernel(%arg0: i32, %arg1: memref<2x8x128xf32, #tpu.memory_space<vmem>>, %arg2: memref<8x128xf32, #tpu.memory_space<vmem>>, %arg3: memref<8x8xf32, #tpu.memory_space<vmem>>, %arg4: memref<2x8x128xf32, #tpu.memory_space<vmem>>, %arg5: memref<8x128xf32, #tpu.memory_space<vmem>>) attributes {dimension_semantics = [#tpu.dimension_semantics<parallel>], iteration_bounds = array<i64: 1>, scalar_prefetch = 0 : i64, scratch_operands = 0 : i64, tpu.core_type = #tpu.core_type<tc>, window_params = [{transform_indices = @transform_0, window_bounds = array<i64: 2, 8, 128>}, {transform_indices = @transform_1, window_bounds = array<i64: 8, 128>}, {pipeline_mode = #tpu.pipeline_mode<synchronous>, transform_indices = @transform_2, window_bounds = array<i64: 8, 8>}, {transform_indices = @transform_3, window_bounds = array<i64: 2, 8, 128>}, {transform_indices = @transform_4, window_bounds = array<i64: 8, 128>}]} {
    %c0 = arith.constant 0 : index
    %c0_0 = arith.constant 0 : index
    %c0_1 = arith.constant 0 : index
    %0 = vector.load %arg1[%c0, %c0_0, %c0_1] : memref<2x8x128xf32, #tpu.memory_space<vmem>>, vector<1x8x128xf32>
    %1 = vector.shape_cast %0 : vector<1x8x128xf32> to vector<8x128xf32>
    %c1 = arith.constant 1 : index
    %c0_2 = arith.constant 0 : index
    %c0_3 = arith.constant 0 : index
    %2 = vector.load %arg1[%c1, %c0_2, %c0_3] : memref<2x8x128xf32, #tpu.memory_space<vmem>>, vector<1x8x128xf32>
    %3 = vector.shape_cast %2 : vector<1x8x128xf32> to vector<8x128xf32>
    %c0_4 = arith.constant 0 : index
    %c0_5 = arith.constant 0 : index
    %4 = vector.load %arg2[%c0_4, %c0_5] : memref<8x128xf32, #tpu.memory_space<vmem>>, vector<8x128xf32>
    %c0_6 = arith.constant 0 : index
    %c0_7 = arith.constant 0 : index
    %5 = vector.load %arg3[%c0_6, %c0_7] : memref<8x8xf32, #tpu.memory_space<vmem>>, vector<8x8xf32>
    %cst = arith.constant dense<0.000000e+00> : vector<8x128xf32>
    %6 = tpu.matmul %5, %1, %cst {dimension_numbers = #tpu.dot_dimension_numbers<[1], [0], [0], [1], [0, 0, 1, 1], [], []>} : vector<8x8xf32>, vector<8x128xf32>, vector<8x128xf32> -> vector<8x128xf32>
    %cst_8 = arith.constant dense<0.000000e+00> : vector<8x128xf32>
    %7 = tpu.matmul %5, %3, %cst_8 {dimension_numbers = #tpu.dot_dimension_numbers<[1], [0], [0], [1], [0, 0, 1, 1], [], []>} : vector<8x8xf32>, vector<8x128xf32>, vector<8x128xf32> -> vector<8x128xf32>
    %8 = arith.mulf %1, %6 : vector<8x128xf32>
    %9 = arith.mulf %3, %7 : vector<8x128xf32>
    %10 = arith.addf %8, %9 : vector<8x128xf32>
    %11 = arith.mulf %6, %6 : vector<8x128xf32>
    %12 = arith.mulf %7, %7 : vector<8x128xf32>
    %13 = arith.addf %11, %12 : vector<8x128xf32>
    %cst_9 = arith.constant 0.000000e+00 : f32
    %14 = vector.broadcast %cst_9 : f32 to vector<8x128xf32>
    %15 = arith.cmpf oge, %10, %14 : vector<8x128xf32>
    %cst_10 = arith.constant 9.99999993E-9 : f32
    %16 = vector.broadcast %cst_10 : f32 to vector<8x128xf32>
    %17 = arith.addf %13, %16 : vector<8x128xf32>
    %18 = arith.divf %10, %17 : vector<8x128xf32>
    %cst_11 = arith.constant 0.000000e+00 : f32
    %19 = vector.broadcast %cst_11 : f32 to vector<8x128xf32>
    %20 = arith.select %15, %19, %18 : vector<8x128xi1>, vector<8x128xf32>
    %cst_12 = arith.constant 2.000000e-01 : f32
    %21 = vector.broadcast %cst_12 : f32 to vector<8x128xf32>
    %22 = arith.mulf %21, %1 : vector<8x128xf32>
    %23 = arith.mulf %20, %6 : vector<8x128xf32>
    %24 = arith.subf %1, %23 : vector<8x128xf32>
    %cst_13 = arith.constant 8.000000e-01 : f32
    %25 = vector.broadcast %cst_13 : f32 to vector<8x128xf32>
    %26 = arith.mulf %25, %24 : vector<8x128xf32>
    %27 = arith.addf %22, %26 : vector<8x128xf32>
    %c0_14 = arith.constant 0 : index
    %c0_15 = arith.constant 0 : index
    %c0_16 = arith.constant 0 : index
    %28 = vector.load %arg4[%c0_14, %c0_15, %c0_16] : memref<2x8x128xf32, #tpu.memory_space<vmem>>, vector<1x8x128xf32>
    %29 = vector.shape_cast %28 : vector<1x8x128xf32> to vector<8x128xf32>
    %30 = vector.shape_cast %27 : vector<8x128xf32> to vector<1x8x128xf32>
    tpu.vector_store %arg4[%c0_14, %c0_15, %c0_16], %30 {strides = array<i32>} : memref<2x8x128xf32, #tpu.memory_space<vmem>>, vector<1x8x128xf32>,
    %cst_17 = arith.constant 2.000000e-01 : f32
    %31 = vector.broadcast %cst_17 : f32 to vector<8x128xf32>
    %32 = arith.mulf %31, %3 : vector<8x128xf32>
    %33 = arith.mulf %20, %7 : vector<8x128xf32>
    %34 = arith.subf %3, %33 : vector<8x128xf32>
    %cst_18 = arith.constant 8.000000e-01 : f32
    %35 = vector.broadcast %cst_18 : f32 to vector<8x128xf32>
    %36 = arith.mulf %35, %34 : vector<8x128xf32>
    %37 = arith.addf %32, %36 : vector<8x128xf32>
    %c1_19 = arith.constant 1 : index
    %c0_20 = arith.constant 0 : index
    %c0_21 = arith.constant 0 : index
    %38 = vector.load %arg4[%c1_19, %c0_20, %c0_21] : memref<2x8x128xf32, #tpu.memory_space<vmem>>, vector<1x8x128xf32>
    %39 = vector.shape_cast %38 : vector<1x8x128xf32> to vector<8x128xf32>
    %40 = vector.shape_cast %37 : vector<8x128xf32> to vector<1x8x128xf32>
    tpu.vector_store %arg4[%c1_19, %c0_20, %c0_21], %40 {strides = array<i32>} : memref<2x8x128xf32, #tpu.memory_space<vmem>>, vector<1x8x128xf32>,
    %cst_22 = arith.constant 0.000000e+00 : f32
    %41 = vector.broadcast %cst_22 : f32 to vector<8x128xf32>
    %42 = arith.maximumf %4, %41 : vector<8x128xf32>
    %c0_23 = arith.constant 0 : index
    %c0_24 = arith.constant 0 : index
    %43 = vector.load %arg5[%c0_23, %c0_24] : memref<8x128xf32, #tpu.memory_space<vmem>>, vector<8x128xf32>
    tpu.vector_store %arg5[%c0_23, %c0_24], %42 {strides = array<i32>} : memref<8x128xf32, #tpu.memory_space<vmem>>, vector<8x128xf32>,
    return
  }
  func.func @transform_0(%arg0: i32) -> (i32, i32, i32) {
    %c0_i32 = arith.constant 0 : i32
    %c0_i32_0 = arith.constant 0 : i32
    %c0_i32_1 = arith.constant 0 : i32
    return %c0_i32, %c0_i32_0, %arg0 : i32, i32, i32
  }
  func.func @transform_1(%arg0: i32) -> (i32, i32) {
    %c0_i32 = arith.constant 0 : i32
    %c0_i32_0 = arith.constant 0 : i32
    return %c0_i32, %arg0 : i32, i32
  }
  func.func @transform_2(%arg0: i32) -> (i32, i32) {
    %c0_i32 = arith.constant 0 : i32
    %c0_i32_0 = arith.constant 0 : i32
    %c0_i32_1 = arith.constant 0 : i32
    return %c0_i32, %c0_i32_0 : i32, i32
  }
  func.func @transform_3(%arg0: i32) -> (i32, i32, i32) {
    %c0_i32 = arith.constant 0 : i32
    %c0_i32_0 = arith.constant 0 : i32
    %c0_i32_1 = arith.constant 0 : i32
    return %c0_i32, %c0_i32_0, %arg0 : i32, i32, i32
  }
  func.func @transform_4(%arg0: i32) -> (i32, i32) {
    %c0_i32 = arith.constant 0 : i32
    %c0_i32_0 = arith.constant 0 : i32
    return %c0_i32, %arg0 : i32, i32
  }
}

module attributes {stable_mosaic.version = 11 : i64} {
  func.func @_nlnorm_kernel(%arg0: i32, %arg1: memref<2x8x128xf32, #tpu.memory_space<vmem>>, %arg2: memref<8x128xf32, #tpu.memory_space<vmem>>, %arg3: memref<16x16xf32, #tpu.memory_space<vmem>>, %arg4: memref<16x1xf32, #tpu.memory_space<vmem>>, %arg5: memref<8x1xf32, #tpu.memory_space<vmem>>, %arg6: memref<8x1xf32, #tpu.memory_space<vmem>>, %arg7: memref<2x8x128xf32, #tpu.memory_space<vmem>>, %arg8: memref<8x128xf32, #tpu.memory_space<vmem>>) attributes {dimension_semantics = [#tpu.dimension_semantics<parallel>], iteration_bounds = array<i64: 1>, scalar_prefetch = 0 : i64, scratch_operands = 0 : i64, tpu.core_type = #tpu.core_type<tc>, window_params = [{transform_indices = @transform_0, window_bounds = array<i64: 2, 8, 128>}, {transform_indices = @transform_1, window_bounds = array<i64: 8, 128>}, {pipeline_mode = #tpu.pipeline_mode<synchronous>, transform_indices = @transform_2, window_bounds = array<i64: 16, 16>}, {pipeline_mode = #tpu.pipeline_mode<synchronous>, transform_indices = @transform_3, window_bounds = array<i64: 16, 1>}, {pipeline_mode = #tpu.pipeline_mode<synchronous>, transform_indices = @transform_4, window_bounds = array<i64: 8, 1>}, {pipeline_mode = #tpu.pipeline_mode<synchronous>, transform_indices = @transform_5, window_bounds = array<i64: 8, 1>}, {transform_indices = @transform_6, window_bounds = array<i64: 2, 8, 128>}, {transform_indices = @transform_7, window_bounds = array<i64: 8, 128>}]} {
    %c0 = arith.constant 0 : index
    %c0_0 = arith.constant 0 : index
    %c0_1 = arith.constant 0 : index
    %0 = vector.load %arg1[%c0, %c0_0, %c0_1] : memref<2x8x128xf32, #tpu.memory_space<vmem>>, vector<1x8x128xf32>
    %1 = vector.shape_cast %0 : vector<1x8x128xf32> to vector<8x128xf32>
    %c1 = arith.constant 1 : index
    %c0_2 = arith.constant 0 : index
    %c0_3 = arith.constant 0 : index
    %2 = vector.load %arg1[%c1, %c0_2, %c0_3] : memref<2x8x128xf32, #tpu.memory_space<vmem>>, vector<1x8x128xf32>
    %3 = vector.shape_cast %2 : vector<1x8x128xf32> to vector<8x128xf32>
    %c0_4 = arith.constant 0 : index
    %c0_5 = arith.constant 0 : index
    %4 = vector.load %arg2[%c0_4, %c0_5] : memref<8x128xf32, #tpu.memory_space<vmem>>, vector<8x128xf32>
    %c0_6 = arith.constant 0 : index
    %c0_7 = arith.constant 0 : index
    %5 = vector.load %arg3[%c0_6, %c0_7] : memref<16x16xf32, #tpu.memory_space<vmem>>, vector<16x16xf32>
    %6 = arith.mulf %1, %1 : vector<8x128xf32>
    %7 = arith.mulf %3, %3 : vector<8x128xf32>
    %8 = arith.addf %6, %7 : vector<8x128xf32>
    %9 = math.sqrt %8 : vector<8x128xf32>
    %10 = vector.extract_strided_slice %5 {offsets = [0, 0], sizes = [16, 8], strides = [1, 1]} : vector<16x16xf32> to vector<16x8xf32>
    %cst = arith.constant dense<0.000000e+00> : vector<16x128xf32>
    %11 = tpu.matmul %10, %9, %cst {dimension_numbers = #tpu.dot_dimension_numbers<[1], [0], [0], [1], [0, 0, 1, 1], [], []>} : vector<16x8xf32>, vector<8x128xf32>, vector<16x128xf32> -> vector<16x128xf32>
    %12 = vector.extract_strided_slice %5 {offsets = [0, 8], sizes = [16, 8], strides = [1, 1]} : vector<16x16xf32> to vector<16x8xf32>
    %cst_8 = arith.constant dense<0.000000e+00> : vector<16x128xf32>
    %13 = tpu.matmul %12, %4, %cst_8 {dimension_numbers = #tpu.dot_dimension_numbers<[1], [0], [0], [1], [0, 0, 1, 1], [], []>} : vector<16x8xf32>, vector<8x128xf32>, vector<16x128xf32> -> vector<16x128xf32>
    %14 = arith.addf %11, %13 : vector<16x128xf32>
    %c0_9 = arith.constant 0 : index
    %c0_10 = arith.constant 0 : index
    %15 = vector.load %arg4[%c0_9, %c0_10] : memref<16x1xf32, #tpu.memory_space<vmem>>, vector<16x1xf32>
    %cst_11 = arith.constant dense<0.000000e+00> : vector<128xf32>
    %16 = vector.multi_reduction <add>, %14, %cst_11 [0] : vector<16x128xf32> to vector<128xf32>
    %17 = vector.shape_cast %16 : vector<128xf32> to vector<1x128xf32>
    %cst_12 = arith.constant 1.600000e+01 : f32
    %18 = vector.broadcast %cst_12 : f32 to vector<1x128xf32>
    %19 = arith.divf %17, %18 : vector<1x128xf32>
    %20 = vector.broadcast %19 : vector<1x128xf32> to vector<16x128xf32>
    %21 = arith.subf %14, %20 : vector<16x128xf32>
    %22 = arith.mulf %21, %21 : vector<16x128xf32>
    %cst_13 = arith.constant dense<0.000000e+00> : vector<128xf32>
    %23 = vector.multi_reduction <add>, %22, %cst_13 [0] : vector<16x128xf32> to vector<128xf32>
    %24 = vector.shape_cast %23 : vector<128xf32> to vector<1x128xf32>
    %cst_14 = arith.constant 1.600000e+01 : f32
    %25 = vector.broadcast %cst_14 : f32 to vector<1x128xf32>
    %26 = arith.divf %24, %25 : vector<1x128xf32>
    %cst_15 = arith.constant 9.99999974E-6 : f32
    %27 = vector.broadcast %cst_15 : f32 to vector<1x128xf32>
    %28 = arith.addf %26, %27 : vector<1x128xf32>
    %29 = math.rsqrt %28 : vector<1x128xf32>
    %30 = vector.broadcast %29 : vector<1x128xf32> to vector<16x128xf32>
    %31 = arith.mulf %21, %30 : vector<16x128xf32>
    %32 = vector.broadcast %15 : vector<16x1xf32> to vector<16x128xf32>
    %33 = arith.mulf %31, %32 : vector<16x128xf32>
    %34 = vector.extract_strided_slice %33 {offsets = [0, 0], sizes = [8, 128], strides = [1, 1]} : vector<16x128xf32> to vector<8x128xf32>
    %35 = vector.extract_strided_slice %33 {offsets = [8, 0], sizes = [8, 128], strides = [1, 1]} : vector<16x128xf32> to vector<8x128xf32>
    %cst_16 = arith.constant 9.99999996E-13 : f32
    %36 = vector.broadcast %cst_16 : f32 to vector<8x128xf32>
    %37 = arith.maximumf %8, %36 : vector<8x128xf32>
    %38 = math.rsqrt %37 : vector<8x128xf32>
    %39 = arith.mulf %34, %38 : vector<8x128xf32>
    %40 = arith.mulf %1, %39 : vector<8x128xf32>
    %41 = arith.mulf %3, %39 : vector<8x128xf32>
    %42 = arith.mulf %40, %40 : vector<8x128xf32>
    %43 = arith.mulf %41, %41 : vector<8x128xf32>
    %44 = arith.addf %42, %43 : vector<8x128xf32>
    %45 = math.sqrt %44 : vector<8x128xf32>
    %c0_17 = arith.constant 0 : index
    %c0_18 = arith.constant 0 : index
    %46 = vector.load %arg5[%c0_17, %c0_18] : memref<8x1xf32, #tpu.memory_space<vmem>>, vector<8x1xf32>
    %cst_19 = arith.constant dense<0.000000e+00> : vector<128xf32>
    %47 = vector.multi_reduction <add>, %45, %cst_19 [0] : vector<8x128xf32> to vector<128xf32>
    %48 = vector.shape_cast %47 : vector<128xf32> to vector<1x128xf32>
    %cst_20 = arith.constant 8.000000e+00 : f32
    %49 = vector.broadcast %cst_20 : f32 to vector<1x128xf32>
    %50 = arith.divf %48, %49 : vector<1x128xf32>
    %51 = vector.broadcast %50 : vector<1x128xf32> to vector<8x128xf32>
    %52 = arith.subf %45, %51 : vector<8x128xf32>
    %53 = arith.mulf %52, %52 : vector<8x128xf32>
    %cst_21 = arith.constant dense<0.000000e+00> : vector<128xf32>
    %54 = vector.multi_reduction <add>, %53, %cst_21 [0] : vector<8x128xf32> to vector<128xf32>
    %55 = vector.shape_cast %54 : vector<128xf32> to vector<1x128xf32>
    %cst_22 = arith.constant 8.000000e+00 : f32
    %56 = vector.broadcast %cst_22 : f32 to vector<1x128xf32>
    %57 = arith.divf %55, %56 : vector<1x128xf32>
    %cst_23 = arith.constant 9.99999974E-6 : f32
    %58 = vector.broadcast %cst_23 : f32 to vector<1x128xf32>
    %59 = arith.addf %57, %58 : vector<1x128xf32>
    %60 = math.rsqrt %59 : vector<1x128xf32>
    %61 = vector.broadcast %60 : vector<1x128xf32> to vector<8x128xf32>
    %62 = arith.mulf %52, %61 : vector<8x128xf32>
    %63 = vector.broadcast %46 : vector<8x1xf32> to vector<8x128xf32>
    %64 = arith.mulf %62, %63 : vector<8x128xf32>
    %cst_24 = arith.constant 9.99999997E-7 : f32
    %65 = vector.broadcast %cst_24 : f32 to vector<8x128xf32>
    %66 = arith.maximumf %44, %65 : vector<8x128xf32>
    %67 = math.rsqrt %66 : vector<8x128xf32>
    %68 = arith.mulf %64, %67 : vector<8x128xf32>
    %69 = arith.mulf %40, %68 : vector<8x128xf32>
    %c0_25 = arith.constant 0 : index
    %c0_26 = arith.constant 0 : index
    %c0_27 = arith.constant 0 : index
    %70 = vector.load %arg7[%c0_25, %c0_26, %c0_27] : memref<2x8x128xf32, #tpu.memory_space<vmem>>, vector<1x8x128xf32>
    %71 = vector.shape_cast %70 : vector<1x8x128xf32> to vector<8x128xf32>
    %72 = vector.shape_cast %69 : vector<8x128xf32> to vector<1x8x128xf32>
    tpu.vector_store %arg7[%c0_25, %c0_26, %c0_27], %72 {strides = array<i32>} : memref<2x8x128xf32, #tpu.memory_space<vmem>>, vector<1x8x128xf32>,
    %73 = arith.mulf %41, %68 : vector<8x128xf32>
    %c1_28 = arith.constant 1 : index
    %c0_29 = arith.constant 0 : index
    %c0_30 = arith.constant 0 : index
    %74 = vector.load %arg7[%c1_28, %c0_29, %c0_30] : memref<2x8x128xf32, #tpu.memory_space<vmem>>, vector<1x8x128xf32>
    %75 = vector.shape_cast %74 : vector<1x8x128xf32> to vector<8x128xf32>
    %76 = vector.shape_cast %73 : vector<8x128xf32> to vector<1x8x128xf32>
    tpu.vector_store %arg7[%c1_28, %c0_29, %c0_30], %76 {strides = array<i32>} : memref<2x8x128xf32, #tpu.memory_space<vmem>>, vector<1x8x128xf32>,
    %c0_31 = arith.constant 0 : index
    %c0_32 = arith.constant 0 : index
    %77 = vector.load %arg6[%c0_31, %c0_32] : memref<8x1xf32, #tpu.memory_space<vmem>>, vector<8x1xf32>
    %cst_33 = arith.constant dense<0.000000e+00> : vector<128xf32>
    %78 = vector.multi_reduction <add>, %35, %cst_33 [0] : vector<8x128xf32> to vector<128xf32>
    %79 = vector.shape_cast %78 : vector<128xf32> to vector<1x128xf32>
    %cst_34 = arith.constant 8.000000e+00 : f32
    %80 = vector.broadcast %cst_34 : f32 to vector<1x128xf32>
    %81 = arith.divf %79, %80 : vector<1x128xf32>
    %82 = vector.broadcast %81 : vector<1x128xf32> to vector<8x128xf32>
    %83 = arith.subf %35, %82 : vector<8x128xf32>
    %84 = arith.mulf %83, %83 : vector<8x128xf32>
    %cst_35 = arith.constant dense<0.000000e+00> : vector<128xf32>
    %85 = vector.multi_reduction <add>, %84, %cst_35 [0] : vector<8x128xf32> to vector<128xf32>
    %86 = vector.shape_cast %85 : vector<128xf32> to vector<1x128xf32>
    %cst_36 = arith.constant 8.000000e+00 : f32
    %87 = vector.broadcast %cst_36 : f32 to vector<1x128xf32>
    %88 = arith.divf %86, %87 : vector<1x128xf32>
    %cst_37 = arith.constant 9.99999974E-6 : f32
    %89 = vector.broadcast %cst_37 : f32 to vector<1x128xf32>
    %90 = arith.addf %88, %89 : vector<1x128xf32>
    %91 = math.rsqrt %90 : vector<1x128xf32>
    %92 = vector.broadcast %91 : vector<1x128xf32> to vector<8x128xf32>
    %93 = arith.mulf %83, %92 : vector<8x128xf32>
    %94 = vector.broadcast %77 : vector<8x1xf32> to vector<8x128xf32>
    %95 = arith.mulf %93, %94 : vector<8x128xf32>
    %c0_38 = arith.constant 0 : index
    %c0_39 = arith.constant 0 : index
    %96 = vector.load %arg8[%c0_38, %c0_39] : memref<8x128xf32, #tpu.memory_space<vmem>>, vector<8x128xf32>
    tpu.vector_store %arg8[%c0_38, %c0_39], %95 {strides = array<i32>} : memref<8x128xf32, #tpu.memory_space<vmem>>, vector<8x128xf32>,
    return
  }
  func.func @transform_0(%arg0: i32) -> (i32, i32, i32) {
    %c0_i32 = arith.constant 0 : i32
    %c0_i32_0 = arith.constant 0 : i32
    %c0_i32_1 = arith.constant 0 : i32
    return %c0_i32, %c0_i32_0, %arg0 : i32, i32, i32
  }
  func.func @transform_1(%arg0: i32) -> (i32, i32) {
    %c0_i32 = arith.constant 0 : i32
    %c0_i32_0 = arith.constant 0 : i32
    return %c0_i32, %arg0 : i32, i32
  }
  func.func @transform_2(%arg0: i32) -> (i32, i32) {
    %c0_i32 = arith.constant 0 : i32
    %c0_i32_0 = arith.constant 0 : i32
    %c0_i32_1 = arith.constant 0 : i32
    return %c0_i32, %c0_i32_0 : i32, i32
  }
  func.func @transform_3(%arg0: i32) -> (i32, i32) {
    %c0_i32 = arith.constant 0 : i32
    %c0_i32_0 = arith.constant 0 : i32
    %c0_i32_1 = arith.constant 0 : i32
    return %c0_i32, %c0_i32_0 : i32, i32
  }
  func.func @transform_4(%arg0: i32) -> (i32, i32) {
    %c0_i32 = arith.constant 0 : i32
    %c0_i32_0 = arith.constant 0 : i32
    %c0_i32_1 = arith.constant 0 : i32
    return %c0_i32, %c0_i32_0 : i32, i32
  }
  func.func @transform_5(%arg0: i32) -> (i32, i32) {
    %c0_i32 = arith.constant 0 : i32
    %c0_i32_0 = arith.constant 0 : i32
    %c0_i32_1 = arith.constant 0 : i32
    return %c0_i32, %c0_i32_0 : i32, i32
  }
  func.func @transform_6(%arg0: i32) -> (i32, i32, i32) {
    %c0_i32 = arith.constant 0 : i32
    %c0_i32_0 = arith.constant 0 : i32
    %c0_i32_1 = arith.constant 0 : i32
    return %c0_i32, %c0_i32_0, %arg0 : i32, i32, i32
  }
  func.func @transform_7(%arg0: i32) -> (i32, i32) {
    %c0_i32 = arith.constant 0 : i32
    %c0_i32_0 = arith.constant 0 : i32
    return %c0_i32, %arg0 : i32, i32
  }
}

module attributes {stable_mosaic.version = 11 : i64} {
  func.func @_act_res_kernel(%arg0: i32, %arg1: memref<2x8x128xf32, #tpu.memory_space<vmem>>, %arg2: memref<8x128xf32, #tpu.memory_space<vmem>>, %arg3: memref<2x8x128xf32, #tpu.memory_space<vmem>>, %arg4: memref<8x128xf32, #tpu.memory_space<vmem>>, %arg5: memref<8x8xf32, #tpu.memory_space<vmem>>, %arg6: memref<2x8x128xf32, #tpu.memory_space<vmem>>, %arg7: memref<8x128xf32, #tpu.memory_space<vmem>>) attributes {dimension_semantics = [#tpu.dimension_semantics<parallel>], iteration_bounds = array<i64: 1>, scalar_prefetch = 0 : i64, scratch_operands = 0 : i64, tpu.core_type = #tpu.core_type<tc>, window_params = [{transform_indices = @transform_0, window_bounds = array<i64: 2, 8, 128>}, {transform_indices = @transform_1, window_bounds = array<i64: 8, 128>}, {transform_indices = @transform_2, window_bounds = array<i64: 2, 8, 128>}, {transform_indices = @transform_3, window_bounds = array<i64: 8, 128>}, {pipeline_mode = #tpu.pipeline_mode<synchronous>, transform_indices = @transform_4, window_bounds = array<i64: 8, 8>}, {transform_indices = @transform_5, window_bounds = array<i64: 2, 8, 128>}, {transform_indices = @transform_6, window_bounds = array<i64: 8, 128>}]} {
    %c0 = arith.constant 0 : index
    %c0_0 = arith.constant 0 : index
    %c0_1 = arith.constant 0 : index
    %0 = vector.load %arg1[%c0, %c0_0, %c0_1] : memref<2x8x128xf32, #tpu.memory_space<vmem>>, vector<1x8x128xf32>
    %1 = vector.shape_cast %0 : vector<1x8x128xf32> to vector<8x128xf32>
    %c0_2 = arith.constant 0 : index
    %c0_3 = arith.constant 0 : index
    %c0_4 = arith.constant 0 : index
    %2 = vector.load %arg3[%c0_2, %c0_3, %c0_4] : memref<2x8x128xf32, #tpu.memory_space<vmem>>, vector<1x8x128xf32>
    %3 = vector.shape_cast %2 : vector<1x8x128xf32> to vector<8x128xf32>
    %4 = arith.addf %1, %3 : vector<8x128xf32>
    %c1 = arith.constant 1 : index
    %c0_5 = arith.constant 0 : index
    %c0_6 = arith.constant 0 : index
    %5 = vector.load %arg1[%c1, %c0_5, %c0_6] : memref<2x8x128xf32, #tpu.memory_space<vmem>>, vector<1x8x128xf32>
    %6 = vector.shape_cast %5 : vector<1x8x128xf32> to vector<8x128xf32>
    %c1_7 = arith.constant 1 : index
    %c0_8 = arith.constant 0 : index
    %c0_9 = arith.constant 0 : index
    %7 = vector.load %arg3[%c1_7, %c0_8, %c0_9] : memref<2x8x128xf32, #tpu.memory_space<vmem>>, vector<1x8x128xf32>
    %8 = vector.shape_cast %7 : vector<1x8x128xf32> to vector<8x128xf32>
    %9 = arith.addf %6, %8 : vector<8x128xf32>
    %c0_10 = arith.constant 0 : index
    %c0_11 = arith.constant 0 : index
    %10 = vector.load %arg2[%c0_10, %c0_11] : memref<8x128xf32, #tpu.memory_space<vmem>>, vector<8x128xf32>
    %c0_12 = arith.constant 0 : index
    %c0_13 = arith.constant 0 : index
    %11 = vector.load %arg4[%c0_12, %c0_13] : memref<8x128xf32, #tpu.memory_space<vmem>>, vector<8x128xf32>
    %12 = arith.addf %10, %11 : vector<8x128xf32>
    %c0_14 = arith.constant 0 : index
    %c0_15 = arith.constant 0 : index
    %13 = vector.load %arg5[%c0_14, %c0_15] : memref<8x8xf32, #tpu.memory_space<vmem>>, vector<8x8xf32>
    %cst = arith.constant dense<0.000000e+00> : vector<8x128xf32>
    %14 = tpu.matmul %13, %4, %cst {dimension_numbers = #tpu.dot_dimension_numbers<[1], [0], [0], [1], [0, 0, 1, 1], [], []>} : vector<8x8xf32>, vector<8x128xf32>, vector<8x128xf32> -> vector<8x128xf32>
    %cst_16 = arith.constant dense<0.000000e+00> : vector<8x128xf32>
    %15 = tpu.matmul %13, %9, %cst_16 {dimension_numbers = #tpu.dot_dimension_numbers<[1], [0], [0], [1], [0, 0, 1, 1], [], []>} : vector<8x8xf32>, vector<8x128xf32>, vector<8x128xf32> -> vector<8x128xf32>
    %16 = arith.mulf %4, %14 : vector<8x128xf32>
    %17 = arith.mulf %9, %15 : vector<8x128xf32>
    %18 = arith.addf %16, %17 : vector<8x128xf32>
    %19 = arith.mulf %14, %14 : vector<8x128xf32>
    %20 = arith.mulf %15, %15 : vector<8x128xf32>
    %21 = arith.addf %19, %20 : vector<8x128xf32>
    %cst_17 = arith.constant 0.000000e+00 : f32
    %22 = vector.broadcast %cst_17 : f32 to vector<8x128xf32>
    %23 = arith.cmpf oge, %18, %22 : vector<8x128xf32>
    %cst_18 = arith.constant 9.99999993E-9 : f32
    %24 = vector.broadcast %cst_18 : f32 to vector<8x128xf32>
    %25 = arith.addf %21, %24 : vector<8x128xf32>
    %26 = arith.divf %18, %25 : vector<8x128xf32>
    %cst_19 = arith.constant 0.000000e+00 : f32
    %27 = vector.broadcast %cst_19 : f32 to vector<8x128xf32>
    %28 = arith.select %23, %27, %26 : vector<8x128xi1>, vector<8x128xf32>
    %cst_20 = arith.constant 2.000000e-01 : f32
    %29 = vector.broadcast %cst_20 : f32 to vector<8x128xf32>
    %30 = arith.mulf %29, %4 : vector<8x128xf32>
    %31 = arith.mulf %28, %14 : vector<8x128xf32>
    %32 = arith.subf %4, %31 : vector<8x128xf32>
    %cst_21 = arith.constant 8.000000e-01 : f32
    %33 = vector.broadcast %cst_21 : f32 to vector<8x128xf32>
    %34 = arith.mulf %33, %32 : vector<8x128xf32>
    %35 = arith.addf %30, %34 : vector<8x128xf32>
    %c0_22 = arith.constant 0 : index
    %c0_23 = arith.constant 0 : index
    %c0_24 = arith.constant 0 : index
    %36 = vector.load %arg6[%c0_22, %c0_23, %c0_24] : memref<2x8x128xf32, #tpu.memory_space<vmem>>, vector<1x8x128xf32>
    %37 = vector.shape_cast %36 : vector<1x8x128xf32> to vector<8x128xf32>
    %38 = vector.shape_cast %35 : vector<8x128xf32> to vector<1x8x128xf32>
    tpu.vector_store %arg6[%c0_22, %c0_23, %c0_24], %38 {strides = array<i32>} : memref<2x8x128xf32, #tpu.memory_space<vmem>>, vector<1x8x128xf32>,
    %cst_25 = arith.constant 2.000000e-01 : f32
    %39 = vector.broadcast %cst_25 : f32 to vector<8x128xf32>
    %40 = arith.mulf %39, %9 : vector<8x128xf32>
    %41 = arith.mulf %28, %15 : vector<8x128xf32>
    %42 = arith.subf %9, %41 : vector<8x128xf32>
    %cst_26 = arith.constant 8.000000e-01 : f32
    %43 = vector.broadcast %cst_26 : f32 to vector<8x128xf32>
    %44 = arith.mulf %43, %42 : vector<8x128xf32>
    %45 = arith.addf %40, %44 : vector<8x128xf32>
    %c1_27 = arith.constant 1 : index
    %c0_28 = arith.constant 0 : index
    %c0_29 = arith.constant 0 : index
    %46 = vector.load %arg6[%c1_27, %c0_28, %c0_29] : memref<2x8x128xf32, #tpu.memory_space<vmem>>, vector<1x8x128xf32>
    %47 = vector.shape_cast %46 : vector<1x8x128xf32> to vector<8x128xf32>
    %48 = vector.shape_cast %45 : vector<8x128xf32> to vector<1x8x128xf32>
    tpu.vector_store %arg6[%c1_27, %c0_28, %c0_29], %48 {strides = array<i32>} : memref<2x8x128xf32, #tpu.memory_space<vmem>>, vector<1x8x128xf32>,
    %cst_30 = arith.constant 0.000000e+00 : f32
    %49 = vector.broadcast %cst_30 : f32 to vector<8x128xf32>
    %50 = arith.maximumf %12, %49 : vector<8x128xf32>
    %c0_31 = arith.constant 0 : index
    %c0_32 = arith.constant 0 : index
    %51 = vector.load %arg7[%c0_31, %c0_32] : memref<8x128xf32, #tpu.memory_space<vmem>>, vector<8x128xf32>
    tpu.vector_store %arg7[%c0_31, %c0_32], %50 {strides = array<i32>} : memref<8x128xf32, #tpu.memory_space<vmem>>, vector<8x128xf32>,
    return
  }
  func.func @transform_0(%arg0: i32) -> (i32, i32, i32) {
    %c0_i32 = arith.constant 0 : i32
    %c0_i32_0 = arith.constant 0 : i32
    %c0_i32_1 = arith.constant 0 : i32
    return %c0_i32, %c0_i32_0, %arg0 : i32, i32, i32
  }
  func.func @transform_1(%arg0: i32) -> (i32, i32) {
    %c0_i32 = arith.constant 0 : i32
    %c0_i32_0 = arith.constant 0 : i32
    return %c0_i32, %arg0 : i32, i32
  }
  func.func @transform_2(%arg0: i32) -> (i32, i32, i32) {
    %c0_i32 = arith.constant 0 : i32
    %c0_i32_0 = arith.constant 0 : i32
    %c0_i32_1 = arith.constant 0 : i32
    return %c0_i32, %c0_i32_0, %arg0 : i32, i32, i32
  }
  func.func @transform_3(%arg0: i32) -> (i32, i32) {
    %c0_i32 = arith.constant 0 : i32
    %c0_i32_0 = arith.constant 0 : i32
    return %c0_i32, %arg0 : i32, i32
  }
  func.func @transform_4(%arg0: i32) -> (i32, i32) {
    %c0_i32 = arith.constant 0 : i32
    %c0_i32_0 = arith.constant 0 : i32
    %c0_i32_1 = arith.constant 0 : i32
    return %c0_i32, %c0_i32_0 : i32, i32
  }
  func.func @transform_5(%arg0: i32) -> (i32, i32, i32) {
    %c0_i32 = arith.constant 0 : i32
    %c0_i32_0 = arith.constant 0 : i32
    %c0_i32_1 = arith.constant 0 : i32
    return %c0_i32, %c0_i32_0, %arg0 : i32, i32, i32
  }
  func.func @transform_6(%arg0: i32) -> (i32, i32) {
    %c0_i32 = arith.constant 0 : i32
    %c0_i32_0 = arith.constant 0 : i32
    return %c0_i32, %arg0 : i32, i32
  }
}

</mosaic_0001>

<llo_original>
// kernel: squeeze.9
$region0: #{squeeze.9}
  %s0 = inlined_call_operand.vmem [shape: f32[8,16,3,1], index: 0, kind: input, shape index: {}]
  %s1 = inlined_call_operand.vmem [shape: f32[8,48], index: 1, kind: output, shape index: {}]
  $region1: #{squeeze.9} parent=0
    #allocation0 [shape = 'u8[65536]{0}', space=vmem, size = 0x10000, scoped, tag = 'scoped mem for input reshape']
    %s3 = ssub.s32 16, 1
    %s4 = scalar_lea.vmem %s0, 60
    %v5 = vld [vmem:[%s4] sm:%s3]
    %s6 = scalar_lea.vmem [#allocation0], 120
    %7 = vst [vmem:[%s6] sm:%s3] %v5
    %s8 = scalar_lea.vmem %s0, 56
    %v9 = vld [vmem:[%s8] sm:%s3]
    %s10 = scalar_lea.vmem [#allocation0], 112
    %11 = vst [vmem:[%s10] sm:%s3] %v9
    %s12 = scalar_lea.vmem %s0, 52
    %v13 = vld [vmem:[%s12] sm:%s3]
    %s14 = scalar_lea.vmem [#allocation0], 104
    %15 = vst [vmem:[%s14] sm:%s3] %v13
    %s16 = scalar_lea.vmem %s0, 48
    %v17 = vld [vmem:[%s16] sm:%s3]
    %s18 = scalar_lea.vmem [#allocation0], 96
    %19 = vst [vmem:[%s18] sm:%s3] %v17
    %s20 = scalar_lea.vmem %s0, 44
    %v21 = vld [vmem:[%s20] sm:%s3]
    %s22 = scalar_lea.vmem [#allocation0], 88
    %23 = vst [vmem:[%s22] sm:%s3] %v21
    %s24 = scalar_lea.vmem %s0, 40
    %v25 = vld [vmem:[%s24] sm:%s3]
    %s26 = scalar_lea.vmem [#allocation0], 80
    %27 = vst [vmem:[%s26] sm:%s3] %v25
    %s28 = scalar_lea.vmem %s0, 36
    %v29 = vld [vmem:[%s28] sm:%s3]
    %s30 = scalar_lea.vmem [#allocation0], 72
    %31 = vst [vmem:[%s30] sm:%s3] %v29
    %s32 = scalar_lea.vmem %s0, 32
    %v33 = vld [vmem:[%s32] sm:%s3]
    %s34 = scalar_lea.vmem [#allocation0], 64
    %35 = vst [vmem:[%s34] sm:%s3] %v33
    %s36 = scalar_lea.vmem %s0, 28
    %v37 = vld [vmem:[%s36] sm:%s3]
    %s38 = scalar_lea.vmem [#allocation0], 56
    %39 = vst [vmem:[%s38] sm:%s3] %v37
    %s40 = scalar_lea.vmem %s0, 24
    %v41 = vld [vmem:[%s40] sm:%s3]
    %s42 = scalar_lea.vmem [#allocation0], 48
    %43 = vst [vmem:[%s42] sm:%s3] %v41
    %s44 = scalar_lea.vmem %s0, 20
    %v45 = vld [vmem:[%s44] sm:%s3]
    %s46 = scalar_lea.vmem [#allocation0], 40
    %47 = vst [vmem:[%s46] sm:%s3] %v45
    %s48 = scalar_lea.vmem %s0, 16
    %v49 = vld [vmem:[%s48] sm:%s3]
    %s50 = scalar_lea.vmem [#allocation0], 32
    %51 = vst [vmem:[%s50] sm:%s3] %v49
    %s52 = scalar_lea.vmem %s0, 12
    %v53 = vld [vmem:[%s52] sm:%s3]
    %s54 = scalar_lea.vmem [#allocation0], 24
    %55 = vst [vmem:[%s54] sm:%s3] %v53
    %s56 = scalar_lea.vmem %s0, 8
    %v57 = vld [vmem:[%s56] sm:%s3]
    %s58 = scalar_lea.vmem [#allocation0], 16
    %59 = vst [vmem:[%s58] sm:%s3] %v57
    %s60 = scalar_lea.vmem %s0, 4
    %v61 = vld [vmem:[%s60] sm:%s3]
    %s62 = scalar_lea.vmem [#allocation0], 8
    %63 = vst [vmem:[%s62] sm:%s3] %v61
    %v64 = vld [vmem:[%s0] sm:%s3]
    %65 = vst [vmem:[#allocation0] sm:%s3] %v64
    %v66 = vld [vmem:[#allocation0] sm:$0x7]
    %vm67 = vcmask 64512
    %68 = vst.msk [vmem:[%s1] sm:$0x7] %vm67, %v66
    %s69 = scalar_lea.vmem [#allocation0], 8
    %v70 = vld [vmem:[%s69] sm:$0x7]
    %vm71 = vcmask 64512
    %s72 = scalar_lea.vmem %s1, 3
    %73 = vst.msk [vmem:[%s72] sm:$0x7] %vm71, %v70
    %s74 = scalar_lea.vmem [#allocation0], 16
    %v75 = vld [vmem:[%s74] sm:$0x7]
    %vm76 = vcmask 64512
    %s77 = scalar_lea.vmem %s1, 6
    %78 = vst.msk [vmem:[%s77] sm:$0x7] %vm76, %v75
    %s79 = scalar_lea.vmem [#allocation0], 24
    %v80 = vld [vmem:[%s79] sm:$0x7]
    %vm81 = vcmask 64512
    %s82 = scalar_lea.vmem %s1, 9
    %83 = vst.msk [vmem:[%s82] sm:$0x7] %vm81, %v80
    %s84 = scalar_lea.vmem [#allocation0], 32
    %v85 = vld [vmem:[%s84] sm:$0x7]
    %vm86 = vcmask 64512
    %s87 = scalar_lea.vmem %s1, 12
    %88 = vst.msk [vmem:[%s87] sm:$0x7] %vm86, %v85
    %s89 = scalar_lea.vmem [#allocation0], 40
    %v90 = vld [vmem:[%s89] sm:$0x7]
    %vm91 = vcmask 64512
    %s92 = scalar_lea.vmem %s1, 15
    %93 = vst.msk [vmem:[%s92] sm:$0x7] %vm91, %v90
    %s94 = scalar_lea.vmem [#allocation0], 48
    %v95 = vld [vmem:[%s94] sm:$0x7]
    %vm96 = vcmask 64512
    %s97 = scalar_lea.vmem %s1, 18
    %98 = vst.msk [vmem:[%s97] sm:$0x7] %vm96, %v95
    %s99 = scalar_lea.vmem [#allocation0], 56
    %v100 = vld [vmem:[%s99] sm:$0x7]
    %vm101 = vcmask 64512
    %s102 = scalar_lea.vmem %s1, 21
    %103 = vst.msk [vmem:[%s102] sm:$0x7] %vm101, %v100
    %s104 = scalar_lea.vmem [#allocation0], 64
    %v105 = vld [vmem:[%s104] sm:$0x7]
    %vm106 = vcmask 64512
    %s107 = scalar_lea.vmem %s1, 24
    %108 = vst.msk [vmem:[%s107] sm:$0x7] %vm106, %v105
    %s109 = scalar_lea.vmem [#allocation0], 72
    %v110 = vld [vmem:[%s109] sm:$0x7]
    %vm111 = vcmask 64512
    %s112 = scalar_lea.vmem %s1, 27
    %113 = vst.msk [vmem:[%s112] sm:$0x7] %vm111, %v110
    %s114 = scalar_lea.vmem [#allocation0], 80
    %v115 = vld [vmem:[%s114] sm:$0x7]
    %vm116 = vcmask 64512
    %s117 = scalar_lea.vmem %s1, 30
    %118 = vst.msk [vmem:[%s117] sm:$0x7] %vm116, %v115
    %s119 = scalar_lea.vmem [#allocation0], 88
    %v120 = vld [vmem:[%s119] sm:$0x7]
    %vm121 = vcmask 64512
    %s122 = scalar_lea.vmem %s1, 33
    %123 = vst.msk [vmem:[%s122] sm:$0x7] %vm121, %v120
    %s124 = scalar_lea.vmem [#allocation0], 96
    %v125 = vld [vmem:[%s124] sm:$0x7]
    %vm126 = vcmask 64512
    %s127 = scalar_lea.vmem %s1, 36
    %128 = vst.msk [vmem:[%s127] sm:$0x7] %vm126, %v125
    %s129 = scalar_lea.vmem [#allocation0], 104
    %v130 = vld [vmem:[%s129] sm:$0x7]
    %vm131 = vcmask 64512
    %s132 = scalar_lea.vmem %s1, 39
    %133 = vst.msk [vmem:[%s132] sm:$0x7] %vm131, %v130
    %s134 = scalar_lea.vmem [#allocation0], 112
    %v135 = vld [vmem:[%s134] sm:$0x7]
    %vm136 = vcmask 64512
    %s137 = scalar_lea.vmem %s1, 42
    %138 = vst.msk [vmem:[%s137] sm:$0x7] %vm136, %v135
    %s139 = scalar_lea.vmem [#allocation0], 120
    %v140 = vld [vmem:[%s139] sm:$0x7]
    %vm141 = vcmask 64512
    %s142 = scalar_lea.vmem %s1, 45
    %143 = vst.msk [vmem:[%s142] sm:$0x7] %vm141, %v140

// kernel: squeeze.10
$region0: #{squeeze.10}
  %s0 = inlined_call_operand.vmem [shape: f32[8,8,3,1], index: 0, kind: input, shape index: {}]
  %s1 = inlined_call_operand.vmem [shape: f32[8,24], index: 1, kind: output, shape index: {}]
  $region1: #{squeeze.10} parent=0
    #allocation0 [shape = 'u8[32768]{0}', space=vmem, size = 0x8000, scoped, tag = 'scoped mem for input reshape']
    %s3 = ssub.s32 16, 1
    %s4 = scalar_lea.vmem %s0, 28
    %v5 = vld [vmem:[%s4] sm:%s3]
    %s6 = scalar_lea.vmem [#allocation0], 56
    %7 = vst [vmem:[%s6] sm:%s3] %v5
    %s8 = scalar_lea.vmem %s0, 24
    %v9 = vld [vmem:[%s8] sm:%s3]
    %s10 = scalar_lea.vmem [#allocation0], 48
    %11 = vst [vmem:[%s10] sm:%s3] %v9
    %s12 = scalar_lea.vmem %s0, 20
    %v13 = vld [vmem:[%s12] sm:%s3]
    %s14 = scalar_lea.vmem [#allocation0], 40
    %15 = vst [vmem:[%s14] sm:%s3] %v13
    %s16 = scalar_lea.vmem %s0, 16
    %v17 = vld [vmem:[%s16] sm:%s3]
    %s18 = scalar_lea.vmem [#allocation0], 32
    %19 = vst [vmem:[%s18] sm:%s3] %v17
    %s20 = scalar_lea.vmem %s0, 12
    %v21 = vld [vmem:[%s20] sm:%s3]
    %s22 = scalar_lea.vmem [#allocation0], 24
    %23 = vst [vmem:[%s22] sm:%s3] %v21
    %s24 = scalar_lea.vmem %s0, 8
    %v25 = vld [vmem:[%s24] sm:%s3]
    %s26 = scalar_lea.vmem [#allocation0], 16
    %27 = vst [vmem:[%s26] sm:%s3] %v25
    %s28 = scalar_lea.vmem %s0, 4
    %v29 = vld [vmem:[%s28] sm:%s3]
    %s30 = scalar_lea.vmem [#allocation0], 8
    %31 = vst [vmem:[%s30] sm:%s3] %v29
    %v32 = vld [vmem:[%s0] sm:%s3]
    %33 = vst [vmem:[#allocation0] sm:%s3] %v32
    %v34 = vld [vmem:[#allocation0] sm:$0x7]
    %vm35 = vcmask 64512
    %36 = vst.msk [vmem:[%s1] sm:$0x7] %vm35, %v34
    %s37 = scalar_lea.vmem [#allocation0], 8
    %v38 = vld [vmem:[%s37] sm:$0x7]
    %vm39 = vcmask 64512
    %s40 = scalar_lea.vmem %s1, 3
    %41 = vst.msk [vmem:[%s40] sm:$0x7] %vm39, %v38
    %s42 = scalar_lea.vmem [#allocation0], 16
    %v43 = vld [vmem:[%s42] sm:$0x7]
    %vm44 = vcmask 64512
    %s45 = scalar_lea.vmem %s1, 6
    %46 = vst.msk [vmem:[%s45] sm:$0x7] %vm44, %v43
    %s47 = scalar_lea.vmem [#allocation0], 24
    %v48 = vld [vmem:[%s47] sm:$0x7]
    %vm49 = vcmask 64512
    %s50 = scalar_lea.vmem %s1, 9
    %51 = vst.msk [vmem:[%s50] sm:$0x7] %vm49, %v48
    %s52 = scalar_lea.vmem [#allocation0], 32
    %v53 = vld [vmem:[%s52] sm:$0x7]
    %vm54 = vcmask 64512
    %s55 = scalar_lea.vmem %s1, 12
    %56 = vst.msk [vmem:[%s55] sm:$0x7] %vm54, %v53
    %s57 = scalar_lea.vmem [#allocation0], 40
    %v58 = vld [vmem:[%s57] sm:$0x7]
    %vm59 = vcmask 64512
    %s60 = scalar_lea.vmem %s1, 15
    %61 = vst.msk [vmem:[%s60] sm:$0x7] %vm59, %v58
    %s62 = scalar_lea.vmem [#allocation0], 48
    %v63 = vld [vmem:[%s62] sm:$0x7]
    %vm64 = vcmask 64512
    %s65 = scalar_lea.vmem %s1, 18
    %66 = vst.msk [vmem:[%s65] sm:$0x7] %vm64, %v63
    %s67 = scalar_lea.vmem [#allocation0], 56
    %v68 = vld [vmem:[%s67] sm:$0x7]
    %vm69 = vcmask 64512
    %s70 = scalar_lea.vmem %s1, 21
    %71 = vst.msk [vmem:[%s70] sm:$0x7] %vm69, %v68

// kernel: basic_block_forward.18
$region0: #{basic_block_forward.18}
  #allocation0 [shape = 'u32[]', space=smem, size = 0x4, offset = 0x4, fixed_abs, tag = 'smem constant byte address 0x4 - core index']
  #allocation1 [shape = 'u32[72,128]{1,0:T(1,128)}', space=vmem, size = 0x9000, scoped, tag = 'internal scratch']
  %s0 = inlined_call_operand.vmem [shape: f32[8,16], index: 0, kind: input, shape index: {}]
  %s1 = inlined_call_operand.vmem [shape: f32[2,16,128], index: 1, kind: input, shape index: {}]
  %s2 = inlined_call_operand.vmem [shape: f32[2,8,128], index: 2, kind: output, shape index: {}]
  %s3 = sld [smem:[#allocation0]]
  $region18: #{basic_block_forward.18} parent=0
    _
  %s5 = ssub.s32 1, %s3
  %s6 = scalar_select 0, %s5, %s3
  // Predicated region
  $region2: #{basic_block_forward.18} parent=0 // pred_check
    _
  $region3: #{basic_block_forward.18} parent=0 // pred_check_branch
    %8 = sbr.rel (0) target = $region5
  $region4: #{basic_block_forward.18} parent=0 // pred_region
    _
  $region5: #{basic_block_forward.18} parent=0 // pred_fallthru
    _
  // Predicated region
  $region6: #{basic_block_forward.18} parent=0 // pred_check
    _
  $region7: #{basic_block_forward.18} parent=0 // pred_check_branch
    %10 = sbr.rel (0) target = $region9
  $region8: #{basic_block_forward.18} parent=0 // pred_region
    _
  $region9: #{basic_block_forward.18} parent=0 // pred_fallthru
    _
  %v11 = vld [vmem:[%s0] sm:$0xff]
  %v12 = vld [vmem:[%s1] sm:$0xff]
  %v13 = vld [vmem:[%s1 + $0x8] sm:$0xff]
  %vm14 = vcmask 130048
  %v16 = vsel %vm14, %v11, 0
  %18 = vmatpush.msra.mxu0 0.0
  %19 = vmatpush.msra.mxu0 0.0
  %20 = vmatpush.msra.mxu0 0.0
  %21 = vmatpush.msra.mxu0 0.0
  %22 = vmatpush.msra.mxu0 0.0
  %23 = vmatpush.msra.mxu0 0.0
  %24 = vmatpush.msra.mxu0 0.0
  %25 = vmatpush.msra.mxu0 0.0
  %26 = vmatpush.msra.mxu0 0.0
  %27 = vmatpush.msra.mxu0 0.0
  %28 = vmatpush.msra.mxu0 0.0
  %29 = vmatpush.msra.mxu0 0.0
  %30 = vmatpush.msra.mxu0 0.0
  %31 = vmatpush.msra.mxu0 0.0
  %32 = vmatpush.msra.mxu0 %v13
  %33 = vmatpush.msra.mxu0 %v12
  %34 = vmatmul.f32.gmra.mxu0 %v16
  %v35 = vpop.f32.mrf.mxu0
  %v36 = vadd.f32 0.0, %v35
  %37 = vdwg.mxu0
  %38 = vst [vmem:[%s2] sm:$0xff] %v36
  %s39 = scalar_lea.vmem %s1, 16
  %v40 = vld [vmem:[%s39] sm:$0xff]
  %v41 = vld [vmem:[%s39 + $0x8] sm:$0xff]
  %42 = vmatpush.msra.mxu0 0.0
  %43 = vmatpush.msra.mxu0 0.0
  %44 = vmatpush.msra.mxu0 0.0
  %45 = vmatpush.msra.mxu0 0.0
  %46 = vmatpush.msra.mxu0 0.0
  %47 = vmatpush.msra.mxu0 0.0
  %48 = vmatpush.msra.mxu0 0.0
  %49 = vmatpush.msra.mxu0 0.0
  %50 = vmatpush.msra.mxu0 0.0
  %51 = vmatpush.msra.mxu0 0.0
  %52 = vmatpush.msra.mxu0 0.0
  %53 = vmatpush.msra.mxu0 0.0
  %54 = vmatpush.msra.mxu0 0.0
  %55 = vmatpush.msra.mxu0 0.0
  %56 = vmatpush.msra.mxu0 %v41
  %57 = vmatpush.msra.mxu0 %v40
  %58 = vmatmul.f32.gmra.mxu0 %v16
  %v59 = vpop.f32.mrf.mxu0
  %v60 = vadd.f32 0.0, %v59
  %61 = vdwg.mxu0
  %s62 = scalar_lea.vmem %s2, 8
  %63 = vst [vmem:[%s62] sm:$0xff] %v60
  // Predicated region
  $region10: #{basic_block_forward.18} parent=0 // pred_check
    _
  $region11: #{basic_block_forward.18} parent=0 // pred_check_branch
    %65 = sbr.rel (0) target = $region13
  $region12: #{basic_block_forward.18} parent=0 // pred_region
    _
  $region13: #{basic_block_forward.18} parent=0 // pred_fallthru
    _
  // Predicated region
  $region14: #{basic_block_forward.18} parent=0 // pred_check
    _
  $region15: #{basic_block_forward.18} parent=0 // pred_check_branch
    %67 = sbr.rel (0) target = $region17
  $region16: #{basic_block_forward.18} parent=0 // pred_region
    _
  $region17: #{basic_block_forward.18} parent=0 // pred_fallthru
    _

// kernel: basic_block_forward.11
$region0: #{basic_block_forward.11}
  #allocation0 [shape = 'u32[]', space=smem, size = 0x4, offset = 0x4, fixed_abs, tag = 'smem constant byte address 0x4 - core index']
  #allocation1 [shape = 'u32[72,128]{1,0:T(1,128)}', space=vmem, size = 0x9000, scoped, tag = 'internal scratch']
  %s0 = inlined_call_operand.vmem [shape: f32[8,48], index: 0, kind: input, shape index: {}]
  %s1 = inlined_call_operand.vmem [shape: f32[2,48,128], index: 1, kind: input, shape index: {}]
  %s2 = inlined_call_operand.vmem [shape: f32[2,8,128], index: 2, kind: output, shape index: {}]
  %s3 = sld [smem:[#allocation0]]
  $region18: #{basic_block_forward.11} parent=0
    _
  %s5 = ssub.s32 1, %s3
  %s6 = scalar_select 0, %s5, %s3
  // Predicated region
  $region2: #{basic_block_forward.11} parent=0 // pred_check
    _
  $region3: #{basic_block_forward.11} parent=0 // pred_check_branch
    %8 = sbr.rel (0) target = $region5
  $region4: #{basic_block_forward.11} parent=0 // pred_region
    _
  $region5: #{basic_block_forward.11} parent=0 // pred_fallthru
    _
  // Predicated region
  $region6: #{basic_block_forward.11} parent=0 // pred_check
    _
  $region7: #{basic_block_forward.11} parent=0 // pred_check_branch
    %10 = sbr.rel (0) target = $region9
  $region8: #{basic_block_forward.11} parent=0 // pred_region
    _
  $region9: #{basic_block_forward.11} parent=0 // pred_fallthru
    _
  %v11 = vld [vmem:[%s0] sm:$0xff]
  %v12 = vld [vmem:[%s1] sm:$0xff]
  %v13 = vld [vmem:[%s1 + $0x8] sm:$0xff]
  %v14 = vld [vmem:[%s1 + $0x10] sm:$0xff]
  %v15 = vld [vmem:[%s1 + $0x18] sm:$0xff]
  %v16 = vld [vmem:[%s1 + $0x20] sm:$0xff]
  %v17 = vld [vmem:[%s1 + $0x28] sm:$0xff]
  %vm18 = vcmask 392192
  %v20 = vsel %vm18, %v11, 0
  %22 = vmatpush.msra.mxu0 0.0
  %23 = vmatpush.msra.mxu0 0.0
  %24 = vmatpush.msra.mxu0 0.0
  %25 = vmatpush.msra.mxu0 0.0
  %26 = vmatpush.msra.mxu0 0.0
  %27 = vmatpush.msra.mxu0 0.0
  %28 = vmatpush.msra.mxu0 0.0
  %29 = vmatpush.msra.mxu0 0.0
  %30 = vmatpush.msra.mxu0 0.0
  %31 = vmatpush.msra.mxu0 0.0
  %32 = vmatpush.msra.mxu0 %v17
  %33 = vmatpush.msra.mxu0 %v16
  %34 = vmatpush.msra.mxu0 %v15
  %35 = vmatpush.msra.mxu0 %v14
  %36 = vmatpush.msra.mxu0 %v13
  %37 = vmatpush.msra.mxu0 %v12
  %38 = vmatmul.f32.gmra.mxu0 %v20
  %v39 = vpop.f32.mrf.mxu0
  %v40 = vadd.f32 0.0, %v39
  %41 = vdwg.mxu0
  %42 = vst [vmem:[%s2] sm:$0xff] %v40
  %s43 = scalar_lea.vmem %s1, 48
  %v44 = vld [vmem:[%s43] sm:$0xff]
  %v45 = vld [vmem:[%s43 + $0x8] sm:$0xff]
  %v46 = vld [vmem:[%s43 + $0x10] sm:$0xff]
  %v47 = vld [vmem:[%s43 + $0x18] sm:$0xff]
  %v48 = vld [vmem:[%s43 + $0x20] sm:$0xff]
  %v49 = vld [vmem:[%s43 + $0x28] sm:$0xff]
  %50 = vmatpush.msra.mxu0 0.0
  %51 = vmatpush.msra.mxu0 0.0
  %52 = vmatpush.msra.mxu0 0.0
  %53 = vmatpush.msra.mxu0 0.0
  %54 = vmatpush.msra.mxu0 0.0
  %55 = vmatpush.msra.mxu0 0.0
  %56 = vmatpush.msra.mxu0 0.0
  %57 = vmatpush.msra.mxu0 0.0
  %58 = vmatpush.msra.mxu0 0.0
  %59 = vmatpush.msra.mxu0 0.0
  %60 = vmatpush.msra.mxu0 %v49
  %61 = vmatpush.msra.mxu0 %v48
  %62 = vmatpush.msra.mxu0 %v47
  %63 = vmatpush.msra.mxu0 %v46
  %64 = vmatpush.msra.mxu0 %v45
  %65 = vmatpush.msra.mxu0 %v44
  %66 = vmatmul.f32.gmra.mxu0 %v20
  %v67 = vpop.f32.mrf.mxu0
  %v68 = vadd.f32 0.0, %v67
  %69 = vdwg.mxu0
  %s70 = scalar_lea.vmem %s2, 8
  %71 = vst [vmem:[%s70] sm:$0xff] %v68
  // Predicated region
  $region10: #{basic_block_forward.11} parent=0 // pred_check
    _
  $region11: #{basic_block_forward.11} parent=0 // pred_check_branch
    %73 = sbr.rel (0) target = $region13
  $region12: #{basic_block_forward.11} parent=0 // pred_region
    _
  $region13: #{basic_block_forward.11} parent=0 // pred_fallthru
    _
  // Predicated region
  $region14: #{basic_block_forward.11} parent=0 // pred_check
    _
  $region15: #{basic_block_forward.11} parent=0 // pred_check_branch
    %75 = sbr.rel (0) target = $region17
  $region16: #{basic_block_forward.11} parent=0 // pred_region
    _
  $region17: #{basic_block_forward.11} parent=0 // pred_fallthru
    _

// kernel: basic_block_forward.12
$region0: #{basic_block_forward.12}
  #allocation0 [shape = 'u32[]', space=smem, size = 0x4, offset = 0x4, fixed_abs, tag = 'smem constant byte address 0x4 - core index']
  #allocation1 [shape = 'u32[72,128]{1,0:T(1,128)}', space=vmem, size = 0x9000, scoped, tag = 'internal scratch']
  %s0 = inlined_call_operand.vmem [shape: f32[8,24], index: 0, kind: input, shape index: {}]
  %s1 = inlined_call_operand.vmem [shape: f32[1,24,128], index: 1, kind: input, shape index: {}]
  %s2 = inlined_call_operand.vmem [shape: f32[1,8,128], index: 2, kind: output, shape index: {}]
  %s3 = sld [smem:[#allocation0]]
  $region18: #{basic_block_forward.12} parent=0
    _
  %s5 = ssub.s32 1, %s3
  %s6 = scalar_select 0, %s5, %s3
  // Predicated region
  $region2: #{basic_block_forward.12} parent=0 // pred_check
    _
  $region3: #{basic_block_forward.12} parent=0 // pred_check_branch
    %8 = sbr.rel (0) target = $region5
  $region4: #{basic_block_forward.12} parent=0 // pred_region
    _
  $region5: #{basic_block_forward.12} parent=0 // pred_fallthru
    _
  // Predicated region
  $region6: #{basic_block_forward.12} parent=0 // pred_check
    _
  $region7: #{basic_block_forward.12} parent=0 // pred_check_branch
    %10 = sbr.rel (0) target = $region9
  $region8: #{basic_block_forward.12} parent=0 // pred_region
    _
  $region9: #{basic_block_forward.12} parent=0 // pred_fallthru
    _
  %v11 = vld [vmem:[%s0] sm:$0xff]
  %v12 = vld [vmem:[%s1] sm:$0xff]
  %v13 = vld [vmem:[%s1 + $0x8] sm:$0xff]
  %v14 = vld [vmem:[%s1 + $0x10] sm:$0xff]
  %vm15 = vcmask 195584
  %v17 = vsel %vm15, %v11, 0
  %19 = vmatpush.msra.mxu0 0.0
  %20 = vmatpush.msra.mxu0 0.0
  %21 = vmatpush.msra.mxu0 0.0
  %22 = vmatpush.msra.mxu0 0.0
  %23 = vmatpush.msra.mxu0 0.0
  %24 = vmatpush.msra.mxu0 0.0
  %25 = vmatpush.msra.mxu0 0.0
  %26 = vmatpush.msra.mxu0 0.0
  %27 = vmatpush.msra.mxu0 0.0
  %28 = vmatpush.msra.mxu0 0.0
  %29 = vmatpush.msra.mxu0 0.0
  %30 = vmatpush.msra.mxu0 0.0
  %31 = vmatpush.msra.mxu0 0.0
  %32 = vmatpush.msra.mxu0 %v14
  %33 = vmatpush.msra.mxu0 %v13
  %34 = vmatpush.msra.mxu0 %v12
  %35 = vmatmul.f32.gmra.mxu0 %v17
  %v36 = vpop.f32.mrf.mxu0
  %v37 = vadd.f32 0.0, %v36
  %38 = vdwg.mxu0
  %39 = vst [vmem:[%s2] sm:$0xff] %v37
  // Predicated region
  $region10: #{basic_block_forward.12} parent=0 // pred_check
    _
  $region11: #{basic_block_forward.12} parent=0 // pred_check_branch
    %41 = sbr.rel (0) target = $region13
  $region12: #{basic_block_forward.12} parent=0 // pred_region
    _
  $region13: #{basic_block_forward.12} parent=0 // pred_fallthru
    _
  // Predicated region
  $region14: #{basic_block_forward.12} parent=0 // pred_check
    _
  $region15: #{basic_block_forward.12} parent=0 // pred_check_branch
    %43 = sbr.rel (0) target = $region17
  $region16: #{basic_block_forward.12} parent=0 // pred_region
    _
  $region17: #{basic_block_forward.12} parent=0 // pred_fallthru
    _

// kernel: basic_block_forward.14
$region0: #{basic_block_forward.14}
  #allocation0 [shape = 'u32[]', space=smem, size = 0x4, offset = 0x4, fixed_abs, tag = 'smem constant byte address 0x4 - core index']
  #allocation1 [shape = 'u32[72,128]{1,0:T(1,128)}', space=vmem, size = 0x9000, scoped, tag = 'internal scratch']
  %s0 = inlined_call_operand.vmem [shape: f32[2,8,128], index: 0, kind: input, shape index: {}]
  %s1 = inlined_call_operand.vmem [shape: f32[8,128], index: 1, kind: input, shape index: {}]
  %s2 = inlined_call_operand.vmem [shape: f32[8,8], index: 2, kind: input, shape index: {}]
  %s3 = inlined_call_operand.vmem [shape: f32[2,8,128], index: 3, kind: output, shape index: {0}]
  %s4 = inlined_call_operand.vmem [shape: f32[8,128], index: 4, kind: output, shape index: {1}]
  %5 = xla_tuple %s3, %s4
  %s6 = sld [smem:[#allocation0]]
  $region30: #{basic_block_forward.14} parent=0
    _
  %s8 = ssub.s32 1, %s6
  %s9 = scalar_select 0, %s8, %s6
  // Predicated region
  $region2: #{basic_block_forward.14} parent=0 // pred_check
    _
  $region3: #{basic_block_forward.14} parent=0 // pred_check_branch
    %11 = sbr.rel (0) target = $region5
  $region4: #{basic_block_forward.14} parent=0 // pred_region
    _
  $region5: #{basic_block_forward.14} parent=0 // pred_fallthru
    _
  // Predicated region
  $region6: #{basic_block_forward.14} parent=0 // pred_check
    _
  $region7: #{basic_block_forward.14} parent=0 // pred_check_branch
    %13 = sbr.rel (0) target = $region9
  $region8: #{basic_block_forward.14} parent=0 // pred_region
    _
  $region9: #{basic_block_forward.14} parent=0 // pred_fallthru
    _
  // Predicated region
  $region10: #{basic_block_forward.14} parent=0 // pred_check
    _
  $region11: #{basic_block_forward.14} parent=0 // pred_check_branch
    %15 = sbr.rel (0) target = $region13
  $region12: #{basic_block_forward.14} parent=0 // pred_region
    _
  $region13: #{basic_block_forward.14} parent=0 // pred_fallthru
    _
  %v16 = vld [vmem:[%s0] sm:$0xff]
  %s17 = scalar_lea.vmem %s0, 8
  %v18 = vld [vmem:[%s17] sm:$0xff]
  %v19 = vld [vmem:[%s1] sm:$0xff]
  %v20 = vld [vmem:[%s2] sm:$0xff]
  %vm21 = vcmask 64512
  %v23 = vsel %vm21, %v20, 0
  %25 = vmatpush.msra.mxu0 0.0
  %26 = vmatpush.msra.mxu0 0.0
  %27 = vmatpush.msra.mxu0 0.0
  %28 = vmatpush.msra.mxu0 0.0
  %29 = vmatpush.msra.mxu0 0.0
  %30 = vmatpush.msra.mxu0 0.0
  %31 = vmatpush.msra.mxu0 0.0
  %32 = vmatpush.msra.mxu0 0.0
  %33 = vmatpush.msra.mxu0 0.0
  %34 = vmatpush.msra.mxu0 0.0
  %35 = vmatpush.msra.mxu0 0.0
  %36 = vmatpush.msra.mxu0 0.0
  %37 = vmatpush.msra.mxu0 0.0
  %38 = vmatpush.msra.mxu0 0.0
  %39 = vmatpush.msra.mxu0 0.0
  %40 = vmatpush.msra.mxu0 %v16
  %41 = vmatmul.f32.gmra.mxu0 %v23
  %v42 = vpop.f32.mrf.mxu0
  %v43 = vadd.f32 0.0, %v42
  %44 = vdwg.mxu0
  %45 = vmatpush.msra.mxu0 0.0
  %46 = vmatpush.msra.mxu0 0.0
  %47 = vmatpush.msra.mxu0 0.0
  %48 = vmatpush.msra.mxu0 0.0
  %49 = vmatpush.msra.mxu0 0.0
  %50 = vmatpush.msra.mxu0 0.0
  %51 = vmatpush.msra.mxu0 0.0
  %52 = vmatpush.msra.mxu0 0.0
  %53 = vmatpush.msra.mxu0 0.0
  %54 = vmatpush.msra.mxu0 0.0
  %55 = vmatpush.msra.mxu0 0.0
  %56 = vmatpush.msra.mxu0 0.0
  %57 = vmatpush.msra.mxu0 0.0
  %58 = vmatpush.msra.mxu0 0.0
  %59 = vmatpush.msra.mxu0 0.0
  %60 = vmatpush.msra.mxu0 %v18
  %61 = vmatmul.f32.gmra.mxu0 %v23
  %v62 = vpop.f32.mrf.mxu0
  %v63 = vadd.f32 0.0, %v62
  %64 = vdwg.mxu0
  %v65 = vmul.f32 %v16, %v43
  %v66 = vmul.f32 %v18, %v63
  %v67 = vadd.f32 %v65, %v66
  %v68 = vmul.f32 %v43, %v43
  %v69 = vmul.f32 %v63, %v63
  %v70 = vadd.f32 %v68, %v69
  %vm71 = vcmp.ge.f32.partialorder %v67, 0.0
  %v72 = vadd.f32 %v70, 1e-08
  %v73 = vrcp.pop %v72
  %v74 = vmul.f32 %v72, %v73
  %v75 = vsub.f32 1.0, %v74
  %v76 = vmul.f32 %v73, %v75
  %v77 = vadd.f32 %v73, %v76
  %vm78 = vweird.f32 %v72
  %vm79 = vweird.f32 %v73
  %vm80 = vmor %vm78, %vm79
  %v81 = vsel %vm80, %v73, %v77
  %v82 = vand.u32 2147483647, %v72
  %vm83 = vcmp.eq.f32.partialorder %v82, 8.507059e+37
  %v84 = vand.u32 %v72, 2147483648
  %v85 = vor.u32 1.1754944e-38, %v84
  %v86 = vsel %vm83, %v85, %v81
  %v87 = vmul.f32 %v67, %v86
  %v88 = vsel %vm71, 0.0, %v87
  %v89 = vmul.f32 %v16, 0.2
  %v90 = vmul.f32 %v88, %v43
  %v91 = vsub.f32 %v16, %v90
  %v92 = vmul.f32 %v91, 0.8
  %v93 = vadd.f32 %v89, %v92
  %94 = vst [vmem:[%s3] sm:$0xff] %v93
  %v95 = vmul.f32 %v18, 0.2
  %v96 = vmul.f32 %v88, %v63
  %v97 = vsub.f32 %v18, %v96
  %v98 = vmul.f32 %v97, 0.8
  %v99 = vadd.f32 %v95, %v98
  %s100 = scalar_lea.vmem %s3, 8
  %101 = vst [vmem:[%s100] sm:$0xff] %v99
  %v102 = vmax.f32 %v19, 0.0
  %103 = vst [vmem:[%s4] sm:$0xff] %v102
  // Predicated region
  $region14: #{basic_block_forward.14} parent=0 // pred_check
    _
  $region15: #{basic_block_forward.14} parent=0 // pred_check_branch
    %105 = sbr.rel (0) target = $region17
  $region16: #{basic_block_forward.14} parent=0 // pred_region
    _
  $region17: #{basic_block_forward.14} parent=0 // pred_fallthru
    _
  // Predicated region
  $region18: #{basic_block_forward.14} parent=0 // pred_check
    _
  $region19: #{basic_block_forward.14} parent=0 // pred_check_branch
    %107 = sbr.rel (0) target = $region21
  $region20: #{basic_block_forward.14} parent=0 // pred_region
    _
  $region21: #{basic_block_forward.14} parent=0 // pred_fallthru
    _
  // Predicated region
  $region22: #{basic_block_forward.14} parent=0 // pred_check
    _
  $region23: #{basic_block_forward.14} parent=0 // pred_check_branch
    %109 = sbr.rel (0) target = $region25
  $region24: #{basic_block_forward.14} parent=0 // pred_region
    _
  $region25: #{basic_block_forward.14} parent=0 // pred_fallthru
    _
  // Predicated region
  $region26: #{basic_block_forward.14} parent=0 // pred_check
    _
  $region27: #{basic_block_forward.14} parent=0 // pred_check_branch
    %111 = sbr.rel (0) target = $region29
  $region28: #{basic_block_forward.14} parent=0 // pred_region
    _
  $region29: #{basic_block_forward.14} parent=0 // pred_fallthru
    _

// kernel: basic_block_forward.19
$region0: #{basic_block_forward.19}
  #allocation0 [shape = 'u32[]', space=smem, size = 0x4, offset = 0x4, fixed_abs, tag = 'smem constant byte address 0x4 - core index']
  #allocation1 [shape = 'u32[72,128]{1,0:T(1,128)}', space=vmem, size = 0x9000, scoped, tag = 'internal scratch']
  %s0 = inlined_call_operand.vmem [shape: f32[8,8], index: 0, kind: input, shape index: {}]
  %s1 = inlined_call_operand.vmem [shape: f32[1,8,128], index: 1, kind: input, shape index: {}]
  %s2 = inlined_call_operand.vmem [shape: f32[1,8,128], index: 2, kind: output, shape index: {}]
  %s3 = sld [smem:[#allocation0]]
  $region18: #{basic_block_forward.19} parent=0
    _
  %s5 = ssub.s32 1, %s3
  %s6 = scalar_select 0, %s5, %s3
  // Predicated region
  $region2: #{basic_block_forward.19} parent=0 // pred_check
    _
  $region3: #{basic_block_forward.19} parent=0 // pred_check_branch
    %8 = sbr.rel (0) target = $region5
  $region4: #{basic_block_forward.19} parent=0 // pred_region
    _
  $region5: #{basic_block_forward.19} parent=0 // pred_fallthru
    _
  // Predicated region
  $region6: #{basic_block_forward.19} parent=0 // pred_check
    _
  $region7: #{basic_block_forward.19} parent=0 // pred_check_branch
    %10 = sbr.rel (0) target = $region9
  $region8: #{basic_block_forward.19} parent=0 // pred_region
    _
  $region9: #{basic_block_forward.19} parent=0 // pred_fallthru
    _
  %v11 = vld [vmem:[%s0] sm:$0xff]
  %v12 = vld [vmem:[%s1] sm:$0xff]
  %vm13 = vcmask 64512
  %v15 = vsel %vm13, %v11, 0
  %17 = vmatpush.msra.mxu0 0.0
  %18 = vmatpush.msra.mxu0 0.0
  %19 = vmatpush.msra.mxu0 0.0
  %20 = vmatpush.msra.mxu0 0.0
  %21 = vmatpush.msra.mxu0 0.0
  %22 = vmatpush.msra.mxu0 0.0
  %23 = vmatpush.msra.mxu0 0.0
  %24 = vmatpush.msra.mxu0 0.0
  %25 = vmatpush.msra.mxu0 0.0
  %26 = vmatpush.msra.mxu0 0.0
  %27 = vmatpush.msra.mxu0 0.0
  %28 = vmatpush.msra.mxu0 0.0
  %29 = vmatpush.msra.mxu0 0.0
  %30 = vmatpush.msra.mxu0 0.0
  %31 = vmatpush.msra.mxu0 0.0
  %32 = vmatpush.msra.mxu0 %v12
  %33 = vmatmul.f32.gmra.mxu0 %v15
  %v34 = vpop.f32.mrf.mxu0
  %v35 = vadd.f32 0.0, %v34
  %36 = vdwg.mxu0
  %37 = vst [vmem:[%s2] sm:$0xff] %v35
  // Predicated region
  $region10: #{basic_block_forward.19} parent=0 // pred_check
    _
  $region11: #{basic_block_forward.19} parent=0 // pred_check_branch
    %39 = sbr.rel (0) target = $region13
  $region12: #{basic_block_forward.19} parent=0 // pred_region
    _
  $region13: #{basic_block_forward.19} parent=0 // pred_fallthru
    _
  // Predicated region
  $region14: #{basic_block_forward.19} parent=0 // pred_check
    _
  $region15: #{basic_block_forward.19} parent=0 // pred_check_branch
    %41 = sbr.rel (0) target = $region17
  $region16: #{basic_block_forward.19} parent=0 // pred_region
    _
  $region17: #{basic_block_forward.19} parent=0 // pred_fallthru
    _

// kernel: basic_block_forward.13
$region0: #{basic_block_forward.13}
  #allocation0 [shape = 'u32[]', space=smem, size = 0x4, offset = 0x4, fixed_abs, tag = 'smem constant byte address 0x4 - core index']
  #allocation1 [shape = 'u32[72,128]{1,0:T(1,128)}', space=vmem, size = 0x9000, scoped, tag = 'internal scratch']
  %s0 = inlined_call_operand.vmem [shape: f32[2,8,128], index: 0, kind: input, shape index: {}]
  %s1 = inlined_call_operand.vmem [shape: f32[8,128], index: 1, kind: input, shape index: {}]
  %s2 = inlined_call_operand.vmem [shape: f32[16,16], index: 2, kind: input, shape index: {}]
  %s3 = inlined_call_operand.vmem [shape: f32[16,1], index: 3, kind: input, shape index: {}]
  %s4 = inlined_call_operand.vmem [shape: f32[8,1], index: 4, kind: input, shape index: {}]
  %s5 = inlined_call_operand.vmem [shape: f32[8,1], index: 5, kind: input, shape index: {}]
  %s6 = inlined_call_operand.vmem [shape: f32[2,8,128], index: 6, kind: output, shape index: {0}]
  %s7 = inlined_call_operand.vmem [shape: f32[8,128], index: 7, kind: output, shape index: {1}]
  %8 = xla_tuple %s6, %s7
  %s9 = sld [smem:[#allocation0]]
  $region42: #{basic_block_forward.13} parent=0
    _
  %s11 = ssub.s32 1, %s9
  %s12 = scalar_select 0, %s11, %s9
  // Predicated region
  $region2: #{basic_block_forward.13} parent=0 // pred_check
    _
  $region3: #{basic_block_forward.13} parent=0 // pred_check_branch
    %14 = sbr.rel (0) target = $region5
  $region4: #{basic_block_forward.13} parent=0 // pred_region
    _
  $region5: #{basic_block_forward.13} parent=0 // pred_fallthru
    _
  // Predicated region
  $region6: #{basic_block_forward.13} parent=0 // pred_check
    _
  $region7: #{basic_block_forward.13} parent=0 // pred_check_branch
    %16 = sbr.rel (0) target = $region9
  $region8: #{basic_block_forward.13} parent=0 // pred_region
    _
  $region9: #{basic_block_forward.13} parent=0 // pred_fallthru
    _
  // Predicated region
  $region10: #{basic_block_forward.13} parent=0 // pred_check
    _
  $region11: #{basic_block_forward.13} parent=0 // pred_check_branch
    %18 = sbr.rel (0) target = $region13
  $region12: #{basic_block_forward.13} parent=0 // pred_region
    _
  $region13: #{basic_block_forward.13} parent=0 // pred_fallthru
    _
  // Predicated region
  $region14: #{basic_block_forward.13} parent=0 // pred_check
    _
  $region15: #{basic_block_forward.13} parent=0 // pred_check_branch
    %20 = sbr.rel (0) target = $region17
  $region16: #{basic_block_forward.13} parent=0 // pred_region
    _
  $region17: #{basic_block_forward.13} parent=0 // pred_fallthru
    _
  // Predicated region
  $region18: #{basic_block_forward.13} parent=0 // pred_check
    _
  $region19: #{basic_block_forward.13} parent=0 // pred_check_branch
    %22 = sbr.rel (0) target = $region21
  $region20: #{basic_block_forward.13} parent=0 // pred_region
    _
  $region21: #{basic_block_forward.13} parent=0 // pred_fallthru
    _
  // Predicated region
  $region22: #{basic_block_forward.13} parent=0 // pred_check
    _
  $region23: #{basic_block_forward.13} parent=0 // pred_check_branch
    %24 = sbr.rel (0) target = $region25
  $region24: #{basic_block_forward.13} parent=0 // pred_region
    _
  $region25: #{basic_block_forward.13} parent=0 // pred_fallthru
    _
  %v25 = vld [vmem:[%s0] sm:$0xff]
  %s26 = scalar_lea.vmem %s0, 8
  %v27 = vld [vmem:[%s26] sm:$0xff]
  %v28 = vld [vmem:[%s1] sm:$0xff]
  %v29 = vld [vmem:[%s2] sm:$0xff]
  %v30 = vld [vmem:[%s2 + $0x8] sm:$0xff]
  %v31 = vmul.f32 %v25, %v25
  %v32 = vmul.f32 %v27, %v27
  %v33 = vadd.f32 %v31, %v32
  %v34 = vrsqrt.pop %v33
  %v35 = vmul.f32 %v34, %v33
  %v36 = vmul.f32 %v35, %v34
  %v37 = vmul.f32 0.5, %v36
  %v38 = vsub.f32 1.5, %v37
  %v39 = vmul.f32 %v34, %v38
  %v40 = vmul.f32 %v33, %v39
  %vm41 = vcmp.eq.f32.partialorder %v33, inf
  %v42 = vsel %vm41, %v33, %v40
  %vm43 = vcmp.eq.f32.partialorder %v33, 0.0
  %v44 = vand.u32 %v33, 2147483648
  %v45 = vsel %vm43, %v44, %v42
  %48 = vrot.lane.b32.xlu0 %v29, 120
  %v49 = vpop.permute.xlu0 %48
  %50 = vrot.lane.b32.xlu0 %v30, 120
  %v51 = vpop.permute.xlu0 %50
  %vm52 = vcmask 64512
  %v53 = vsel %vm52, %v49, 0
  %v55 = vsel %vm52, %v51, 0
  %57 = vmatpush.msra.mxu0 0.0
  %58 = vmatpush.msra.mxu0 0.0
  %59 = vmatpush.msra.mxu0 0.0
  %60 = vmatpush.msra.mxu0 0.0
  %61 = vmatpush.msra.mxu0 0.0
  %62 = vmatpush.msra.mxu0 0.0
  %63 = vmatpush.msra.mxu0 0.0
  %64 = vmatpush.msra.mxu0 0.0
  %65 = vmatpush.msra.mxu0 0.0
  %66 = vmatpush.msra.mxu0 0.0
  %67 = vmatpush.msra.mxu0 0.0
  %68 = vmatpush.msra.mxu0 0.0
  %69 = vmatpush.msra.mxu0 0.0
  %70 = vmatpush.msra.mxu0 0.0
  %71 = vmatpush.msra.mxu0 0.0
  %72 = vmatpush.msra.mxu0 %v28
  %73 = vmatmul.f32.gmra.mxu0 %v53
  %v74 = vpop.f32.mrf.mxu0
  %v75 = vadd.f32 0.0, %v74
  %76 = vmatmul.f32.gmra.mxu0 %v55
  %v77 = vpop.f32.mrf.mxu0
  %v78 = vadd.f32 0.0, %v77
  %79 = vdwg.mxu0
  %v80 = vsel %vm52, %v29, 0
  %v82 = vsel %vm52, %v30, 0
  %84 = vmatpush.msra.mxu0 0.0
  %85 = vmatpush.msra.mxu0 0.0
  %86 = vmatpush.msra.mxu0 0.0
  %87 = vmatpush.msra.mxu0 0.0
  %88 = vmatpush.msra.mxu0 0.0
  %89 = vmatpush.msra.mxu0 0.0
  %90 = vmatpush.msra.mxu0 0.0
  %91 = vmatpush.msra.mxu0 0.0
  %92 = vmatpush.msra.mxu0 0.0
  %93 = vmatpush.msra.mxu0 0.0
  %94 = vmatpush.msra.mxu0 0.0
  %95 = vmatpush.msra.mxu0 0.0
  %96 = vmatpush.msra.mxu0 0.0
  %97 = vmatpush.msra.mxu0 0.0
  %98 = vmatpush.msra.mxu0 0.0
  %99 = vmatpush.msra.mxu0 %v45
  %100 = vmatmul.f32.gmra.mxu0 %v80
  %v101 = vpop.f32.mrf.mxu0
  %v102 = vadd.f32 %v75, %v101
  %103 = vmatmul.f32.gmra.mxu0 %v82
  %v104 = vpop.f32.mrf.mxu0
  %v105 = vadd.f32 %v78, %v104
  %106 = vdwg.mxu0
  %v107 = vld [vmem:[%s3] sm:$0xff]
  %v108 = vld [vmem:[%s3 + $0x8] sm:$0xff]
  %v109 = vadd.f32 %v102, %v105
  %v110 = vrot.slane %v109, 4
  %v111 = vadd.f32 %v109, %v110
  %v112 = vrot.slane %v111, 2
  %v113 = vadd.f32 %v111, %v112
  %v114 = vrot.slane %v113, 1
  %v115 = vadd.f32 %v113, %v114
  %v116 = vrcp.pop 16.0
  %v117 = vmul.f32 16.0, %v116
  %v118 = vsub.f32 1.0, %v117
  %v119 = vmul.f32 %v116, %v118
  %v120 = vadd.f32 %v116, %v119
  %vm121 = vweird.f32 %v116
  %v122 = vsel %vm121, %v116, %v120
  %v123 = vmul.f32 %v115, %v122
  %v124 = vsub.f32 %v102, %v123
  %v125 = vsub.f32 %v105, %v123
  %v126 = vmul.f32 %v124, %v124
  %v127 = vmul.f32 %v125, %v125
  %v128 = vadd.f32 %v126, %v127
  %v129 = vrot.slane %v128, 4
  %v130 = vadd.f32 %v128, %v129
  %v131 = vrot.slane %v130, 2
  %v132 = vadd.f32 %v130, %v131
  %v133 = vrot.slane %v132, 1
  %v134 = vadd.f32 %v132, %v133
  %v135 = vmul.f32 %v134, %v122
  %v136 = vadd.f32 %v135, 1e-05
  %v137 = vrsqrt.pop %v136
  %v138 = vmul.f32 %v137, %v136
  %v139 = vmul.f32 %v138, %v137
  %v140 = vmul.f32 0.5, %v139
  %v141 = vsub.f32 1.5, %v140
  %v142 = vmul.f32 %v137, %v141
  %vm143 = vweird.f32 %v136
  %vm144 = vweird.f32 %v137
  %vm145 = vmor %vm143, %vm144
  %v146 = vsel %vm145, %v137, %v142
  %v147 = vmul.f32 %v124, %v146
  %v148 = vmul.f32 %v125, %v146
  %150 = vset.pattern.permute.xlu0 0
  %151 = vperm.xlu0 %150, %v107
  %v152 = vpop.permute.xlu0 %151
  %155 = vset.pattern.permute.xlu0 0
  %156 = vperm.xlu0 %155, %v108
  %v157 = vpop.permute.xlu0 %156
  %v159 = vmul.f32 %v147, %v152
  %v160 = vmul.f32 %v148, %v157
  %v161 = vmax.f32 %v33, 1e-12
  %v162 = vrsqrt.pop %v161
  %v163 = vmul.f32 %v162, %v161
  %v164 = vmul.f32 %v163, %v162
  %v165 = vmul.f32 0.5, %v164
  %v166 = vsub.f32 1.5, %v165
  %v167 = vmul.f32 %v162, %v166
  %vm168 = vweird.f32 %v161
  %vm169 = vweird.f32 %v162
  %vm170 = vmor %vm168, %vm169
  %v171 = vsel %vm170, %v162, %v167
  %v172 = vmul.f32 %v159, %v171
  %v173 = vmul.f32 %v25, %v172
  %v174 = vmul.f32 %v27, %v172
  %v175 = vmul.f32 %v173, %v173
  %v176 = vmul.f32 %v174, %v174
  %v177 = vadd.f32 %v175, %v176
  %v178 = vrsqrt.pop %v177
  %v179 = vmul.f32 %v178, %v177
  %v180 = vmul.f32 %v179, %v178
  %v181 = vmul.f32 0.5, %v180
  %v182 = vsub.f32 1.5, %v181
  %v183 = vmul.f32 %v178, %v182
  %v184 = vmul.f32 %v177, %v183
  %vm185 = vcmp.eq.f32.partialorder %v177, inf
  %v186 = vsel %vm185, %v177, %v184
  %vm187 = vcmp.eq.f32.partialorder %v177, 0.0
  %v188 = vand.u32 %v177, 2147483648
  %v189 = vsel %vm187, %v188, %v186
  %v190 = vld [vmem:[%s4] sm:$0xff]
  %v191 = vrot.slane %v189, 4
  %v192 = vadd.f32 %v189, %v191
  %v193 = vrot.slane %v192, 2
  %v194 = vadd.f32 %v192, %v193
  %v195 = vrot.slane %v194, 1
  %v196 = vadd.f32 %v194, %v195
  %v197 = vrcp.pop 8.0
  %v198 = vmul.f32 8.0, %v197
  %v199 = vsub.f32 1.0, %v198
  %v200 = vmul.f32 %v197, %v199
  %v201 = vadd.f32 %v197, %v200
  %vm202 = vweird.f32 %v197
  %v203 = vsel %vm202, %v197, %v201
  %v204 = vmul.f32 %v196, %v203
  %v205 = vsub.f32 %v189, %v204
  %v206 = vmul.f32 %v205, %v205
  %v207 = vrot.slane %v206, 4
  %v208 = vadd.f32 %v206, %v207
  %v209 = vrot.slane %v208, 2
  %v210 = vadd.f32 %v208, %v209
  %v211 = vrot.slane %v210, 1
  %v212 = vadd.f32 %v210, %v211
  %v213 = vmul.f32 %v212, %v203
  %v214 = vadd.f32 %v213, 1e-05
  %v215 = vrsqrt.pop %v214
  %v216 = vmul.f32 %v215, %v214
  %v217 = vmul.f32 %v216, %v215
  %v218 = vmul.f32 0.5, %v217
  %v219 = vsub.f32 1.5, %v218
  %v220 = vmul.f32 %v215, %v219
  %vm221 = vweird.f32 %v214
  %vm222 = vweird.f32 %v215
  %vm223 = vmor %vm221, %vm222
  %v224 = vsel %vm223, %v215, %v220
  %v225 = vmul.f32 %v205, %v224
  %227 = vset.pattern.permute.xlu0 0
  %228 = vperm.xlu0 %227, %v190
  %v229 = vpop.permute.xlu0 %228
  %v231 = vmul.f32 %v225, %v229
  %v232 = vmax.f32 %v177, 1e-06
  %v233 = vrsqrt.pop %v232
  %v234 = vmul.f32 %v233, %v232
  %v235 = vmul.f32 %v234, %v233
  %v236 = vmul.f32 0.5, %v235
  %v237 = vsub.f32 1.5, %v236
  %v238 = vmul.f32 %v233, %v237
  %vm239 = vweird.f32 %v232
  %vm240 = vweird.f32 %v233
  %vm241 = vmor %vm239, %vm240
  %v242 = vsel %vm241, %v233, %v238
  %v243 = vmul.f32 %v231, %v242
  %v244 = vmul.f32 %v173, %v243
  %245 = vst [vmem:[%s6] sm:$0xff] %v244
  %v246 = vmul.f32 %v174, %v243
  %s247 = scalar_lea.vmem %s6, 8
  %248 = vst [vmem:[%s247] sm:$0xff] %v246
  %v249 = vld [vmem:[%s5] sm:$0xff]
  %v250 = vrot.slane %v160, 4
  %v251 = vadd.f32 %v160, %v250
  %v252 = vrot.slane %v251, 2
  %v253 = vadd.f32 %v251, %v252
  %v254 = vrot.slane %v253, 1
  %v255 = vadd.f32 %v253, %v254
  %v256 = vmul.f32 %v255, %v203
  %v257 = vsub.f32 %v160, %v256
  %v258 = vmul.f32 %v257, %v257
  %v259 = vrot.slane %v258, 4
  %v260 = vadd.f32 %v258, %v259
  %v261 = vrot.slane %v260, 2
  %v262 = vadd.f32 %v260, %v261
  %v263 = vrot.slane %v262, 1
  %v264 = vadd.f32 %v262, %v263
  %v265 = vmul.f32 %v264, %v203
  %v266 = vadd.f32 %v265, 1e-05
  %v267 = vrsqrt.pop %v266
  %v268 = vmul.f32 %v267, %v266
  %v269 = vmul.f32 %v268, %v267
  %v270 = vmul.f32 0.5, %v269
  %v271 = vsub.f32 1.5, %v270
  %v272 = vmul.f32 %v267, %v271
  %vm273 = vweird.f32 %v266
  %vm274 = vweird.f32 %v267
  %vm275 = vmor %vm273, %vm274
  %v276 = vsel %vm275, %v267, %v272
  %v277 = vmul.f32 %v257, %v276
  %279 = vset.pattern.permute.xlu0 0
  %280 = vperm.xlu0 %279, %v249
  %v281 = vpop.permute.xlu0 %280
  %v283 = vmul.f32 %v277, %v281
  %284 = vst [vmem:[%s7] sm:$0xff] %v283
  // Predicated region
  $region26: #{basic_block_forward.13} parent=0 // pred_check
    _
  $region27: #{basic_block_forward.13} parent=0 // pred_check_branch
    %286 = sbr.rel (0) target = $region29
  $region28: #{basic_block_forward.13} parent=0 // pred_region
    _
  $region29: #{basic_block_forward.13} parent=0 // pred_fallthru
    _
  // Predicated region
  $region30: #{basic_block_forward.13} parent=0 // pred_check
    _
  $region31: #{basic_block_forward.13} parent=0 // pred_check_branch
    %288 = sbr.rel (0) target = $region33
  $region32: #{basic_block_forward.13} parent=0 // pred_region
    _
  $region33: #{basic_block_forward.13} parent=0 // pred_fallthru
    _
  // Predicated region
  $region34: #{basic_block_forward.13} parent=0 // pred_check
    _
  $region35: #{basic_block_forward.13} parent=0 // pred_check_branch
    %290 = sbr.rel (0) target = $region37
  $region36: #{basic_block_forward.13} parent=0 // pred_region
    _
  $region37: #{basic_block_forward.13} parent=0 // pred_fallthru
    _
  // Predicated region
  $region38: #{basic_block_forward.13} parent=0 // pred_check
    _
  $region39: #{basic_block_forward.13} parent=0 // pred_check_branch
    %292 = sbr.rel (0) target = $region41
  $region40: #{basic_block_forward.13} parent=0 // pred_region
    _
  $region41: #{basic_block_forward.13} parent=0 // pred_fallthru
    _

// kernel: basic_block_forward.21
$region0: #{basic_block_forward.21}
  #allocation0 [shape = 'u32[]', space=smem, size = 0x4, offset = 0x4, fixed_abs, tag = 'smem constant byte address 0x4 - core index']
  #allocation1 [shape = 'u32[72,128]{1,0:T(1,128)}', space=vmem, size = 0x9000, scoped, tag = 'internal scratch']
  %s0 = inlined_call_operand.vmem [shape: f32[2,8,128], index: 0, kind: input, shape index: {}]
  %s1 = inlined_call_operand.vmem [shape: f32[8,128], index: 1, kind: input, shape index: {}]
  %s2 = inlined_call_operand.vmem [shape: f32[2,8,128], index: 2, kind: input, shape index: {}]
  %s3 = inlined_call_operand.vmem [shape: f32[8,128], index: 3, kind: input, shape index: {}]
  %s4 = inlined_call_operand.vmem [shape: f32[8,8], index: 4, kind: input, shape index: {}]
  %s5 = inlined_call_operand.vmem [shape: f32[2,8,128], index: 5, kind: output, shape index: {0}]
  %s6 = inlined_call_operand.vmem [shape: f32[8,128], index: 6, kind: output, shape index: {1}]
  %7 = xla_tuple %s5, %s6
  %s8 = sld [smem:[#allocation0]]
  $region38: #{basic_block_forward.21} parent=0
    _
  %s10 = ssub.s32 1, %s8
  %s11 = scalar_select 0, %s10, %s8
  // Predicated region
  $region2: #{basic_block_forward.21} parent=0 // pred_check
    _
  $region3: #{basic_block_forward.21} parent=0 // pred_check_branch
    %13 = sbr.rel (0) target = $region5
  $region4: #{basic_block_forward.21} parent=0 // pred_region
    _
  $region5: #{basic_block_forward.21} parent=0 // pred_fallthru
    _
  // Predicated region
  $region6: #{basic_block_forward.21} parent=0 // pred_check
    _
  $region7: #{basic_block_forward.21} parent=0 // pred_check_branch
    %15 = sbr.rel (0) target = $region9
  $region8: #{basic_block_forward.21} parent=0 // pred_region
    _
  $region9: #{basic_block_forward.21} parent=0 // pred_fallthru
    _
  // Predicated region
  $region10: #{basic_block_forward.21} parent=0 // pred_check
    _
  $region11: #{basic_block_forward.21} parent=0 // pred_check_branch
    %17 = sbr.rel (0) target = $region13
  $region12: #{basic_block_forward.21} parent=0 // pred_region
    _
  $region13: #{basic_block_forward.21} parent=0 // pred_fallthru
    _
  // Predicated region
  $region14: #{basic_block_forward.21} parent=0 // pred_check
    _
  $region15: #{basic_block_forward.21} parent=0 // pred_check_branch
    %19 = sbr.rel (0) target = $region17
  $region16: #{basic_block_forward.21} parent=0 // pred_region
    _
  $region17: #{basic_block_forward.21} parent=0 // pred_fallthru
    _
  // Predicated region
  $region18: #{basic_block_forward.21} parent=0 // pred_check
    _
  $region19: #{basic_block_forward.21} parent=0 // pred_check_branch
    %21 = sbr.rel (0) target = $region21
  $region20: #{basic_block_forward.21} parent=0 // pred_region
    _
  $region21: #{basic_block_forward.21} parent=0 // pred_fallthru
    _
  %v22 = vld [vmem:[%s0] sm:$0xff]
  %v23 = vld [vmem:[%s2] sm:$0xff]
  %v24 = vadd.f32 %v22, %v23
  %s25 = scalar_lea.vmem %s0, 8
  %v26 = vld [vmem:[%s25] sm:$0xff]
  %s27 = scalar_lea.vmem %s2, 8
  %v28 = vld [vmem:[%s27] sm:$0xff]
  %v29 = vadd.f32 %v26, %v28
  %v30 = vld [vmem:[%s1] sm:$0xff]
  %v31 = vld [vmem:[%s3] sm:$0xff]
  %v32 = vadd.f32 %v30, %v31
  %v33 = vld [vmem:[%s4] sm:$0xff]
  %vm34 = vcmask 64512
  %v36 = vsel %vm34, %v33, 0
  %38 = vmatpush.msra.mxu0 0.0
  %39 = vmatpush.msra.mxu0 0.0
  %40 = vmatpush.msra.mxu0 0.0
  %41 = vmatpush.msra.mxu0 0.0
  %42 = vmatpush.msra.mxu0 0.0
  %43 = vmatpush.msra.mxu0 0.0
  %44 = vmatpush.msra.mxu0 0.0
  %45 = vmatpush.msra.mxu0 0.0
  %46 = vmatpush.msra.mxu0 0.0
  %47 = vmatpush.msra.mxu0 0.0
  %48 = vmatpush.msra.mxu0 0.0
  %49 = vmatpush.msra.mxu0 0.0
  %50 = vmatpush.msra.mxu0 0.0
  %51 = vmatpush.msra.mxu0 0.0
  %52 = vmatpush.msra.mxu0 0.0
  %53 = vmatpush.msra.mxu0 %v24
  %54 = vmatmul.f32.gmra.mxu0 %v36
  %v55 = vpop.f32.mrf.mxu0
  %v56 = vadd.f32 0.0, %v55
  %57 = vdwg.mxu0
  %58 = vmatpush.msra.mxu0 0.0
  %59 = vmatpush.msra.mxu0 0.0
  %60 = vmatpush.msra.mxu0 0.0
  %61 = vmatpush.msra.mxu0 0.0
  %62 = vmatpush.msra.mxu0 0.0
  %63 = vmatpush.msra.mxu0 0.0
  %64 = vmatpush.msra.mxu0 0.0
  %65 = vmatpush.msra.mxu0 0.0
  %66 = vmatpush.msra.mxu0 0.0
  %67 = vmatpush.msra.mxu0 0.0
  %68 = vmatpush.msra.mxu0 0.0
  %69 = vmatpush.msra.mxu0 0.0
  %70 = vmatpush.msra.mxu0 0.0
  %71 = vmatpush.msra.mxu0 0.0
  %72 = vmatpush.msra.mxu0 0.0
  %73 = vmatpush.msra.mxu0 %v29
  %74 = vmatmul.f32.gmra.mxu0 %v36
  %v75 = vpop.f32.mrf.mxu0
  %v76 = vadd.f32 0.0, %v75
  %77 = vdwg.mxu0
  %v78 = vmul.f32 %v24, %v56
  %v79 = vmul.f32 %v29, %v76
  %v80 = vadd.f32 %v78, %v79
  %v81 = vmul.f32 %v56, %v56
  %v82 = vmul.f32 %v76, %v76
  %v83 = vadd.f32 %v81, %v82
  %vm84 = vcmp.ge.f32.partialorder %v80, 0.0
  %v85 = vadd.f32 %v83, 1e-08
  %v86 = vrcp.pop %v85
  %v87 = vmul.f32 %v85, %v86
  %v88 = vsub.f32 1.0, %v87
  %v89 = vmul.f32 %v86, %v88
  %v90 = vadd.f32 %v86, %v89
  %vm91 = vweird.f32 %v85
  %vm92 = vweird.f32 %v86
  %vm93 = vmor %vm91, %vm92
  %v94 = vsel %vm93, %v86, %v90
  %v95 = vand.u32 2147483647, %v85
  %vm96 = vcmp.eq.f32.partialorder %v95, 8.507059e+37
  %v97 = vand.u32 %v85, 2147483648
  %v98 = vor.u32 1.1754944e-38, %v97
  %v99 = vsel %vm96, %v98, %v94
  %v100 = vmul.f32 %v80, %v99
  %v101 = vsel %vm84, 0.0, %v100
  %v102 = vmul.f32 %v24, 0.2
  %v103 = vmul.f32 %v101, %v56
  %v104 = vsub.f32 %v24, %v103
  %v105 = vmul.f32 %v104, 0.8
  %v106 = vadd.f32 %v102, %v105
  %107 = vst [vmem:[%s5] sm:$0xff] %v106
  %v108 = vmul.f32 %v29, 0.2
  %v109 = vmul.f32 %v101, %v76
  %v110 = vsub.f32 %v29, %v109
  %v111 = vmul.f32 %v110, 0.8
  %v112 = vadd.f32 %v108, %v111
  %s113 = scalar_lea.vmem %s5, 8
  %114 = vst [vmem:[%s113] sm:$0xff] %v112
  %v115 = vmax.f32 %v32, 0.0
  %116 = vst [vmem:[%s6] sm:$0xff] %v115
  // Predicated region
  $region22: #{basic_block_forward.21} parent=0 // pred_check
    _
  $region23: #{basic_block_forward.21} parent=0 // pred_check_branch
    %118 = sbr.rel (0) target = $region25
  $region24: #{basic_block_forward.21} parent=0 // pred_region
    _
  $region25: #{basic_block_forward.21} parent=0 // pred_fallthru
    _
  // Predicated region
  $region26: #{basic_block_forward.21} parent=0 // pred_check
    _
  $region27: #{basic_block_forward.21} parent=0 // pred_check_branch
    %120 = sbr.rel (0) target = $region29
  $region28: #{basic_block_forward.21} parent=0 // pred_region
    _
  $region29: #{basic_block_forward.21} parent=0 // pred_fallthru
    _
  // Predicated region
  $region30: #{basic_block_forward.21} parent=0 // pred_check
    _
  $region31: #{basic_block_forward.21} parent=0 // pred_check_branch
    %122 = sbr.rel (0) target = $region33
  $region32: #{basic_block_forward.21} parent=0 // pred_region
    _
  $region33: #{basic_block_forward.21} parent=0 // pred_fallthru
    _
  // Predicated region
  $region34: #{basic_block_forward.21} parent=0 // pred_check
    _
  $region35: #{basic_block_forward.21} parent=0 // pred_check_branch
    %124 = sbr.rel (0) target = $region37
  $region36: #{basic_block_forward.21} parent=0 // pred_region
    _
  $region37: #{basic_block_forward.21} parent=0 // pred_fallthru
    _

</llo_original>
